<compile_context>
chip_gen: v5e
topology: v5e:2x2
jax: 0.10.0
libtpu: 0.0.40
codegen_flags: <defaults>
</compile_context>

<pallas_src>
import functools

import jax
import jax.numpy as jnp
from jax.experimental import pallas as pl
from jax.experimental.pallas import tpu as pltpu

D_IN = 784          # MNIST flattened
D_HID = 256
LATENT_PAD = 128    # lane-dense padding for each z_dim-sized latent tensor


def _round_up(x, m):
    return (x + m - 1) // m * m


def _default_block_b():
    """512 rows on v5e-and-older (16 MiB default scoped VMEM), 1024 on v6e/v7x."""
    kind = jax.devices()[0].device_kind.lower()
    if any(v in kind for v in ("v2", "v3", "v4", "v5")):
        return 512
    return 1024


def _vae_kernel(x_ref, eps_ref,
                w1_ref, b1_ref, w23_ref, b23_ref,
                w4_ref, b4_ref, w5_ref, b5_ref,
                recon_ref, ms_ref):
    # encode: h = relu(x @ W1 + b1)   (bf16 MXU inputs, f32 accumulate)
    x = x_ref[...].astype(jnp.bfloat16)
    h = jnp.dot(x, w1_ref[...], preferred_element_type=jnp.float32) + b1_ref[...]
    h = jnp.maximum(h, 0.0)

    # fused latent head: one MXU pass producing [mu | 0.5*log_sigma],
    # each half padded to 128 lanes (padding columns of W23/b23 are zero).
    latent = jnp.dot(h.astype(jnp.bfloat16), w23_ref[...],
                     preferred_element_type=jnp.float32) + b23_ref[...]
    mu = latent[:, :LATENT_PAD]
    sigma = jnp.exp(latent[:, LATENT_PAD:])    # 0.5 factor pre-folded into W3/b3

    # reparameterize: z = mu + sigma * eps.  Padded lanes of z only feed the
    # zero rows of W4, so whatever sits in the eps pad lanes never affects the
    # outputs (mu/sigma pads are sliced off in the wrapper).
    z = mu + sigma * eps_ref[...]

    # decode: d = relu(z @ W4 + b4); recon = sigmoid(d @ W5 + b5)
    d = jnp.dot(z.astype(jnp.bfloat16), w4_ref[...],
                preferred_element_type=jnp.float32) + b4_ref[...]
    d = jnp.maximum(d, 0.0)
    logits = jnp.dot(d.astype(jnp.bfloat16), w5_ref[...],
                     preferred_element_type=jnp.float32) + b5_ref[...]
    # sigmoid via a single EUP tanh push (no exp / approx-reciprocal chain)
    recon = 0.5 * jnp.tanh(0.5 * logits) + 0.5

    recon_ref[...] = recon.astype(recon_ref.dtype)
    # lane-dense packed [mu || sigma] output slab (two aligned 128-wide stores)
    ms_ref[:, :LATENT_PAD] = mu
    ms_ref[:, LATENT_PAD:] = sigma


def pack_params(params, z_dim):
    """Fuse/pad the PyTorch-style params for the kernel (done once, outside jit)."""
    (w1, b1, w2, b2, w3, b3, w4, b4, w5, b5) = params   # w: [in, out], b: [1, out]

    # Fused encoder head: cols [0:z)=W2 (mu), cols [128:128+z)=0.5*W3 (half log_sigma)
    w23 = jnp.zeros((D_HID, 2 * LATENT_PAD), jnp.float32)
    w23 = w23.at[:, :z_dim].set(w2)
    w23 = w23.at[:, LATENT_PAD:LATENT_PAD + z_dim].set(0.5 * w3)
    b23 = jnp.zeros((1, 2 * LATENT_PAD), jnp.float32)
    b23 = b23.at[:, :z_dim].set(b2)
    b23 = b23.at[:, LATENT_PAD:LATENT_PAD + z_dim].set(0.5 * b3)

    # Decoder input padded to 128 rows (extra rows are zero).
    w4p = jnp.zeros((LATENT_PAD, D_HID), jnp.float32).at[:z_dim, :].set(w4)

    # bf16 weights (MXU inputs); biases stay f32 (added post-accumulation).
    return (w1.astype(jnp.bfloat16), b1,
            w23.astype(jnp.bfloat16), b23,
            w4p.astype(jnp.bfloat16), b4,
            w5.astype(jnp.bfloat16), b5)


def vae_forward(x, eps, packed_params, *, z_dim, block_b=None):
    """x: [B, 784] (f32 or bf16); eps: [B, z_dim] or [B, 128] f32 (randn_like draw).

    Returns (recon [B,784] bf16, mu [B,z_dim] f32, sigma [B,z_dim] f32).
    """
    if block_b is None:
        block_b = _default_block_b()
    return _vae_forward(x, eps, packed_params, z_dim=z_dim, block_b=block_b)


@functools.partial(jax.jit, static_argnames=("z_dim", "block_b"))
def _vae_forward(x, eps, packed_params, *, z_dim, block_b):
    (w1, b1, w23, b23, w4, b4, w5, b5) = packed_params
    B = x.shape[0]

    # Batch tile: always a multiple of 16 so bf16 tiles stay (16,128)-aligned.
    block_b = _round_up(block_b, 16)
    TB = min(block_b, _round_up(B, 16))
    if B >= 256:
        # Guarantee >= 2 grid steps so the "parallel" batch axis can span both
        # TensorCores on v7x (harmless on single-core v5e/v6e).
        TB = min(TB, _round_up((B + 1) // 2, 16))
    TB = _round_up(TB, 16)
    Bp = _round_up(B, TB)

    # eps: accept a pre-padded (B, 128) draw (no wrapper copy) or the natural
    # (B, z_dim) randn_like shape (pad lanes are ignored by construction).
    if eps.shape[1] != LATENT_PAD:
        eps = jnp.pad(eps, ((0, 0), (0, LATENT_PAD - eps.shape[1])))
    # Only materialize padded copies when the batch doesn't tile evenly.
    if Bp != B:
        x = jnp.pad(x, ((0, Bp - B), (0, 0)))
        eps = jnp.pad(eps, ((0, Bp - B), (0, 0)))

    row_spec = lambda n: pl.BlockSpec((TB, n), lambda i: (i, 0))        # per-tile
    full_spec = lambda shape: pl.BlockSpec(shape, lambda i: (0, 0))     # resident

    weight_bytes = sum(int(w.size) * w.dtype.itemsize
                       for w in (w1, b1, w23, b23, w4, b4, w5, b5))
    cost = pl.CostEstimate(
        flops=2 * Bp * (D_IN * D_HID + D_HID * 2 * LATENT_PAD
                        + LATENT_PAD * D_HID + D_HID * D_IN),
        transcendentals=Bp * (LATENT_PAD + D_IN),      # exp (sigma) + tanh (sigmoid)
        bytes_accessed=int(x.size) * x.dtype.itemsize
        + int(eps.size) * eps.dtype.itemsize
        + Bp * D_IN * 2                                # recon (bf16)
        + Bp * 2 * LATENT_PAD * 4                      # [mu || sigma] (f32)
        + weight_bytes)

    recon_p, ms = pl.pallas_call(
        _vae_kernel,
        grid=(Bp // TB,),
        in_specs=[
            row_spec(D_IN),                        # x
            row_spec(LATENT_PAD),                  # eps (lane-padded)
            full_spec((D_IN, D_HID)),              # w1
            full_spec((1, D_HID)),                 # b1
            full_spec((D_HID, 2 * LATENT_PAD)),    # w23 (fused mu / 0.5*log_sigma)
            full_spec((1, 2 * LATENT_PAD)),        # b23
            full_spec((LATENT_PAD, D_HID)),        # w4 (row-padded)
            full_spec((1, D_HID)),                 # b4
            full_spec((D_HID, D_IN)),              # w5
            full_spec((1, D_IN)),                  # b5
        ],
        out_specs=(row_spec(D_IN), row_spec(2 * LATENT_PAD)),
        out_shape=(jax.ShapeDtypeStruct((Bp, D_IN), jnp.bfloat16),
                   jax.ShapeDtypeStruct((Bp, 2 * LATENT_PAD), jnp.float32)),
        compiler_params=pltpu.CompilerParams(
            dimension_semantics=("parallel",)),
        cost_estimate=cost,
    )(x, eps, w1, b1, w23, b23, w4, b4, w5, b5)

    recon = recon_p[:B]
    mu = ms[:B, :z_dim]
    sigma = ms[:B, LATENT_PAD:LATENT_PAD + z_dim]
    return recon, mu, sigma


def init_params(key, z_dim):
    """Deterministic PyTorch-Linear-style init; weights stored as [in, out]."""
    def linear(key, fan_in, fan_out):
        kw, kb = jax.random.split(key)
        bound = 1.0 / jnp.sqrt(fan_in)
        w = jax.random.uniform(kw, (fan_in, fan_out), jnp.float32, -bound, bound)
        b = jax.random.uniform(kb, (1, fan_out), jnp.float32, -bound, bound)
        return w, b

    k1, k2, k3, k4, k5 = jax.random.split(key, 5)
    w1, b1 = linear(k1, D_IN, D_HID)
    w2, b2 = linear(k2, D_HID, z_dim)
    w3, b3 = linear(k3, D_HID, z_dim)
    w4, b4 = linear(k4, z_dim, D_HID)
    w5, b5 = linear(k5, D_HID, D_IN)
    return (w1, b1, w2, b2, w3, b3, w4, b4, w5, b5)


def reference_forward(x, eps, params):
    """Pure-JAX f32 reference of the original PyTorch forward."""
    (w1, b1, w2, b2, w3, b3, w4, b4, w5, b5) = params
    h = jnp.maximum(x @ w1 + b1, 0.0)
    mu = h @ w2 + b2
    log_sigma = h @ w3 + b3
    sigma = jnp.exp(0.5 * log_sigma)
    z = mu + sigma * eps
    d = jnp.maximum(z @ w4 + b4, 0.0)
    recon = jax.nn.sigmoid(d @ w5 + b5)
    return recon, mu, sigma


if __name__ == "__main__":
    z_dim = 16
    batch = 8  # small test shape; larger batches tile via the 1-D grid

    key = jax.random.PRNGKey(0)
    k_params, k_x, k_eps = jax.random.split(key, 3)

    params = init_params(k_params, z_dim)
    packed = pack_params(params, z_dim)

    x = jax.random.uniform(k_x, (batch, D_IN), jnp.float32)
    # epsilon (the randn_like draw) generated directly at the lane-padded width
    # so the wrapper never materializes a padded HBM copy; only the first z_dim
    # lanes are semantically meaningful.
    eps = jax.random.normal(k_eps, (batch, LATENT_PAD), jnp.float32)

    recon, mu, sigma = vae_forward(x, eps, packed, z_dim=z_dim)
    jax.block_until_ready((recon, mu, sigma))

    # numeric check against a plain-JAX f32 reference (bf16 weights + bf16
    # recon output -> loosened tolerances vs the pure-f32 math)
    r_ref, m_ref, s_ref = reference_forward(x, eps[:, :z_dim], params)
    assert recon.shape == (batch, D_IN) and recon.dtype == jnp.bfloat16
    assert mu.shape == (batch, z_dim) and sigma.shape == (batch, z_dim)
    assert jnp.allclose(recon.astype(jnp.float32), r_ref, atol=3e-2, rtol=3e-2)
    assert jnp.allclose(mu, m_ref, atol=3e-2, rtol=3e-2)
    assert jnp.allclose(sigma, s_ref, atol=3e-2, rtol=3e-2)

    print("KERNEL_OK")
</pallas_src>

<mosaic_0001>
module attributes {stable_mosaic.version = 11 : i64} {
  func.func @_vae_kernel(%arg0: i32, %arg1: memref<16x784xf32, #tpu.memory_space<vmem>>, %arg2: memref<16x128xf32, #tpu.memory_space<vmem>>, %arg3: memref<784x256xbf16, #tpu.memory_space<vmem>>, %arg4: memref<1x256xf32, #tpu.memory_space<vmem>>, %arg5: memref<256x256xbf16, #tpu.memory_space<vmem>>, %arg6: memref<1x256xf32, #tpu.memory_space<vmem>>, %arg7: memref<128x256xbf16, #tpu.memory_space<vmem>>, %arg8: memref<1x256xf32, #tpu.memory_space<vmem>>, %arg9: memref<256x784xbf16, #tpu.memory_space<vmem>>, %arg10: memref<1x784xf32, #tpu.memory_space<vmem>>, %arg11: memref<16x784xbf16, #tpu.memory_space<vmem>>, %arg12: memref<16x256xf32, #tpu.memory_space<vmem>>) attributes {dimension_semantics = [#tpu.dimension_semantics<parallel>], iteration_bounds = array<i64: 1>, scalar_prefetch = 0 : i64, scratch_operands = 0 : i64, tpu.core_type = #tpu.core_type<tc>, window_params = [{transform_indices = @transform_0, window_bounds = array<i64: 16, 784>}, {transform_indices = @transform_1, window_bounds = array<i64: 16, 128>}, {pipeline_mode = #tpu.pipeline_mode<synchronous>, transform_indices = @transform_2, window_bounds = array<i64: 784, 256>}, {pipeline_mode = #tpu.pipeline_mode<synchronous>, transform_indices = @transform_3, window_bounds = array<i64: 1, 256>}, {pipeline_mode = #tpu.pipeline_mode<synchronous>, transform_indices = @transform_4, window_bounds = array<i64: 256, 256>}, {pipeline_mode = #tpu.pipeline_mode<synchronous>, transform_indices = @transform_5, window_bounds = array<i64: 1, 256>}, {pipeline_mode = #tpu.pipeline_mode<synchronous>, transform_indices = @transform_6, window_bounds = array<i64: 128, 256>}, {pipeline_mode = #tpu.pipeline_mode<synchronous>, transform_indices = @transform_7, window_bounds = array<i64: 1, 256>}, {pipeline_mode = #tpu.pipeline_mode<synchronous>, transform_indices = @transform_8, window_bounds = array<i64: 256, 784>}, {pipeline_mode = #tpu.pipeline_mode<synchronous>, transform_indices = @transform_9, window_bounds = array<i64: 1, 784>}, {transform_indices = @transform_10, window_bounds = array<i64: 16, 784>}, {transform_indices = @transform_11, window_bounds = array<i64: 16, 256>}]} {
    %c0 = arith.constant 0 : index
    %c0_0 = arith.constant 0 : index
    %0 = vector.load %arg1[%c0, %c0_0] : memref<16x784xf32, #tpu.memory_space<vmem>>, vector<16x784xf32>
    %1 = arith.truncf %0 : vector<16x784xf32> to vector<16x784xbf16>
    %c0_1 = arith.constant 0 : index
    %c0_2 = arith.constant 0 : index
    %2 = vector.load %arg3[%c0_1, %c0_2] : memref<784x256xbf16, #tpu.memory_space<vmem>>, vector<784x256xbf16>
    %cst = arith.constant dense<0.000000e+00> : vector<16x256xf32>
    %3 = tpu.matmul %1, %2, %cst {dimension_numbers = #tpu.dot_dimension_numbers<[1], [0], [0], [1], [0, 0, 1, 1], [], []>} : vector<16x784xbf16>, vector<784x256xbf16>, vector<16x256xf32> -> vector<16x256xf32>
    %c0_3 = arith.constant 0 : index
    %c0_4 = arith.constant 0 : index
    %4 = vector.load %arg4[%c0_3, %c0_4] : memref<1x256xf32, #tpu.memory_space<vmem>>, vector<1x256xf32>
    %5 = vector.broadcast %4 : vector<1x256xf32> to vector<16x256xf32>
    %6 = arith.addf %3, %5 : vector<16x256xf32>
    %cst_5 = arith.constant 0.000000e+00 : f32
    %7 = vector.broadcast %cst_5 : f32 to vector<16x256xf32>
    %8 = arith.maximumf %6, %7 : vector<16x256xf32>
    %9 = arith.truncf %8 : vector<16x256xf32> to vector<16x256xbf16>
    %c0_6 = arith.constant 0 : index
    %c0_7 = arith.constant 0 : index
    %10 = vector.load %arg5[%c0_6, %c0_7] : memref<256x256xbf16, #tpu.memory_space<vmem>>, vector<256x256xbf16>
    %cst_8 = arith.constant dense<0.000000e+00> : vector<16x256xf32>
    %11 = tpu.matmul %9, %10, %cst_8 {dimension_numbers = #tpu.dot_dimension_numbers<[1], [0], [0], [1], [0, 0, 1, 1], [], []>} : vector<16x256xbf16>, vector<256x256xbf16>, vector<16x256xf32> -> vector<16x256xf32>
    %c0_9 = arith.constant 0 : index
    %c0_10 = arith.constant 0 : index
    %12 = vector.load %arg6[%c0_9, %c0_10] : memref<1x256xf32, #tpu.memory_space<vmem>>, vector<1x256xf32>
    %13 = vector.broadcast %12 : vector<1x256xf32> to vector<16x256xf32>
    %14 = arith.addf %11, %13 : vector<16x256xf32>
    %15 = vector.extract_strided_slice %14 {offsets = [0, 0], sizes = [16, 128], strides = [1, 1]} : vector<16x256xf32> to vector<16x128xf32>
    %16 = vector.extract_strided_slice %14 {offsets = [0, 128], sizes = [16, 128], strides = [1, 1]} : vector<16x256xf32> to vector<16x128xf32>
    %17 = math.exp %16 : vector<16x128xf32>
    %c0_11 = arith.constant 0 : index
    %c0_12 = arith.constant 0 : index
    %18 = vector.load %arg2[%c0_11, %c0_12] : memref<16x128xf32, #tpu.memory_space<vmem>>, vector<16x128xf32>
    %19 = arith.mulf %17, %18 : vector<16x128xf32>
    %20 = arith.addf %15, %19 : vector<16x128xf32>
    %21 = arith.truncf %20 : vector<16x128xf32> to vector<16x128xbf16>
    %c0_13 = arith.constant 0 : index
    %c0_14 = arith.constant 0 : index
    %22 = vector.load %arg7[%c0_13, %c0_14] : memref<128x256xbf16, #tpu.memory_space<vmem>>, vector<128x256xbf16>
    %cst_15 = arith.constant dense<0.000000e+00> : vector<16x256xf32>
    %23 = tpu.matmul %21, %22, %cst_15 {dimension_numbers = #tpu.dot_dimension_numbers<[1], [0], [0], [1], [0, 0, 1, 1], [], []>} : vector<16x128xbf16>, vector<128x256xbf16>, vector<16x256xf32> -> vector<16x256xf32>
    %c0_16 = arith.constant 0 : index
    %c0_17 = arith.constant 0 : index
    %24 = vector.load %arg8[%c0_16, %c0_17] : memref<1x256xf32, #tpu.memory_space<vmem>>, vector<1x256xf32>
    %25 = vector.broadcast %24 : vector<1x256xf32> to vector<16x256xf32>
    %26 = arith.addf %23, %25 : vector<16x256xf32>
    %cst_18 = arith.constant 0.000000e+00 : f32
    %27 = vector.broadcast %cst_18 : f32 to vector<16x256xf32>
    %28 = arith.maximumf %26, %27 : vector<16x256xf32>
    %29 = arith.truncf %28 : vector<16x256xf32> to vector<16x256xbf16>
    %c0_19 = arith.constant 0 : index
    %c0_20 = arith.constant 0 : index
    %30 = vector.load %arg9[%c0_19, %c0_20] : memref<256x784xbf16, #tpu.memory_space<vmem>>, vector<256x784xbf16>
    %cst_21 = arith.constant dense<0.000000e+00> : vector<16x784xf32>
    %31 = tpu.matmul %29, %30, %cst_21 {dimension_numbers = #tpu.dot_dimension_numbers<[1], [0], [0], [1], [0, 0, 1, 1], [], []>} : vector<16x256xbf16>, vector<256x784xbf16>, vector<16x784xf32> -> vector<16x784xf32>
    %c0_22 = arith.constant 0 : index
    %c0_23 = arith.constant 0 : index
    %32 = vector.load %arg10[%c0_22, %c0_23] : memref<1x784xf32, #tpu.memory_space<vmem>>, vector<1x784xf32>
    %33 = vector.broadcast %32 : vector<1x784xf32> to vector<16x784xf32>
    %34 = arith.addf %31, %33 : vector<16x784xf32>
    %cst_24 = arith.constant 5.000000e-01 : f32
    %35 = vector.broadcast %cst_24 : f32 to vector<16x784xf32>
    %36 = arith.mulf %35, %34 : vector<16x784xf32>
    %37 = math.tanh %36 : vector<16x784xf32>
    %cst_25 = arith.constant 5.000000e-01 : f32
    %38 = vector.broadcast %cst_25 : f32 to vector<16x784xf32>
    %39 = arith.mulf %38, %37 : vector<16x784xf32>
    %cst_26 = arith.constant 5.000000e-01 : f32
    %40 = vector.broadcast %cst_26 : f32 to vector<16x784xf32>
    %41 = arith.addf %39, %40 : vector<16x784xf32>
    %42 = arith.truncf %41 : vector<16x784xf32> to vector<16x784xbf16>
    %c0_27 = arith.constant 0 : index
    %c0_28 = arith.constant 0 : index
    %43 = vector.load %arg11[%c0_27, %c0_28] : memref<16x784xbf16, #tpu.memory_space<vmem>>, vector<16x784xbf16>
    tpu.vector_store %arg11[%c0_27, %c0_28], %42 {strides = array<i32>} : memref<16x784xbf16, #tpu.memory_space<vmem>>, vector<16x784xbf16>,
    %c0_29 = arith.constant 0 : index
    %c0_30 = arith.constant 0 : index
    %44 = vector.load %arg12[%c0_29, %c0_30] : memref<16x256xf32, #tpu.memory_space<vmem>>, vector<16x128xf32>
    tpu.vector_store %arg12[%c0_29, %c0_30], %15 {strides = array<i32>} : memref<16x256xf32, #tpu.memory_space<vmem>>, vector<16x128xf32>,
    %c0_31 = arith.constant 0 : index
    %c128 = arith.constant 128 : index
    %45 = vector.load %arg12[%c0_31, %c128] : memref<16x256xf32, #tpu.memory_space<vmem>>, vector<16x128xf32>
    tpu.vector_store %arg12[%c0_31, %c128], %17 {strides = array<i32>} : memref<16x256xf32, #tpu.memory_space<vmem>>, vector<16x128xf32>,
    return
  }
  func.func @transform_0(%arg0: i32) -> (i32, i32) {
    %c0_i32 = arith.constant 0 : i32
    %c0_i32_0 = arith.constant 0 : i32
    return %arg0, %c0_i32 : i32, i32
  }
  func.func @transform_1(%arg0: i32) -> (i32, i32) {
    %c0_i32 = arith.constant 0 : i32
    %c0_i32_0 = arith.constant 0 : i32
    return %arg0, %c0_i32 : i32, i32
  }
  func.func @transform_2(%arg0: i32) -> (i32, i32) {
    %c0_i32 = arith.constant 0 : i32
    %c0_i32_0 = arith.constant 0 : i32
    %c0_i32_1 = arith.constant 0 : i32
    return %c0_i32, %c0_i32_0 : i32, i32
  }
  func.func @transform_3(%arg0: i32) -> (i32, i32) {
    %c0_i32 = arith.constant 0 : i32
    %c0_i32_0 = arith.constant 0 : i32
    %c0_i32_1 = arith.constant 0 : i32
    return %c0_i32, %c0_i32_0 : i32, i32
  }
  func.func @transform_4(%arg0: i32) -> (i32, i32) {
    %c0_i32 = arith.constant 0 : i32
    %c0_i32_0 = arith.constant 0 : i32
    %c0_i32_1 = arith.constant 0 : i32
    return %c0_i32, %c0_i32_0 : i32, i32
  }
  func.func @transform_5(%arg0: i32) -> (i32, i32) {
    %c0_i32 = arith.constant 0 : i32
    %c0_i32_0 = arith.constant 0 : i32
    %c0_i32_1 = arith.constant 0 : i32
    return %c0_i32, %c0_i32_0 : i32, i32
  }
  func.func @transform_6(%arg0: i32) -> (i32, i32) {
    %c0_i32 = arith.constant 0 : i32
    %c0_i32_0 = arith.constant 0 : i32
    %c0_i32_1 = arith.constant 0 : i32
    return %c0_i32, %c0_i32_0 : i32, i32
  }
  func.func @transform_7(%arg0: i32) -> (i32, i32) {
    %c0_i32 = arith.constant 0 : i32
    %c0_i32_0 = arith.constant 0 : i32
    %c0_i32_1 = arith.constant 0 : i32
    return %c0_i32, %c0_i32_0 : i32, i32
  }
  func.func @transform_8(%arg0: i32) -> (i32, i32) {
    %c0_i32 = arith.constant 0 : i32
    %c0_i32_0 = arith.constant 0 : i32
    %c0_i32_1 = arith.constant 0 : i32
    return %c0_i32, %c0_i32_0 : i32, i32
  }
  func.func @transform_9(%arg0: i32) -> (i32, i32) {
    %c0_i32 = arith.constant 0 : i32
    %c0_i32_0 = arith.constant 0 : i32
    %c0_i32_1 = arith.constant 0 : i32
    return %c0_i32, %c0_i32_0 : i32, i32
  }
  func.func @transform_10(%arg0: i32) -> (i32, i32) {
    %c0_i32 = arith.constant 0 : i32
    %c0_i32_0 = arith.constant 0 : i32
    return %arg0, %c0_i32 : i32, i32
  }
  func.func @transform_11(%arg0: i32) -> (i32, i32) {
    %c0_i32 = arith.constant 0 : i32
    %c0_i32_0 = arith.constant 0 : i32
    return %arg0, %c0_i32 : i32, i32
  }
}

</mosaic_0001>

<llo_original>
// kernel: _vae_forward.1
$region0: #{_vae_forward.1}
  #allocation0 [shape = 'u32[]', space=smem, size = 0x4, offset = 0x4, fixed_abs, tag = 'smem constant byte address 0x4 - core index']
  #allocation1 [shape = 'u32[72,128]{1,0:T(1,128)}', space=vmem, size = 0x9000, scoped, tag = 'internal scratch']
  %s0 = inlined_call_operand.vmem [shape: f32[16,784], index: 0, kind: input, shape index: {}]
  %s1 = inlined_call_operand.vmem [shape: f32[16,128], index: 1, kind: input, shape index: {}]
  %s2 = inlined_call_operand.vmem [shape: bf16[784,256], index: 2, kind: input, shape index: {}]
  %s3 = inlined_call_operand.vmem [shape: f32[1,256], index: 3, kind: input, shape index: {}]
  %s4 = inlined_call_operand.vmem [shape: bf16[256,256], index: 4, kind: input, shape index: {}]
  %s5 = inlined_call_operand.vmem [shape: f32[1,256], index: 5, kind: input, shape index: {}]
  %s6 = inlined_call_operand.vmem [shape: bf16[128,256], index: 6, kind: input, shape index: {}]
  %s7 = inlined_call_operand.vmem [shape: f32[1,256], index: 7, kind: input, shape index: {}]
  %s8 = inlined_call_operand.vmem [shape: bf16[256,784], index: 8, kind: input, shape index: {}]
  %s9 = inlined_call_operand.vmem [shape: f32[1,784], index: 9, kind: input, shape index: {}]
  %s10 = inlined_call_operand.vmem [shape: bf16[16,784], index: 10, kind: output, shape index: {0}]
  %s11 = inlined_call_operand.vmem [shape: f32[16,256], index: 11, kind: output, shape index: {1}]
  %12 = xla_tuple %s10, %s11
  %s13 = sld [smem:[#allocation0]]
  $region58: #{_vae_forward.1} parent=0
    _
  %s15 = ssub.s32 1, %s13
  %s16 = scalar_select 0, %s15, %s13
  // Predicated region
  $region2: #{_vae_forward.1} parent=0 // pred_check
    _
  $region3: #{_vae_forward.1} parent=0 // pred_check_branch
    %18 = sbr.rel (0) target = $region5
  $region4: #{_vae_forward.1} parent=0 // pred_region
    _
  $region5: #{_vae_forward.1} parent=0 // pred_fallthru
    _
  // Predicated region
  $region6: #{_vae_forward.1} parent=0 // pred_check
    _
  $region7: #{_vae_forward.1} parent=0 // pred_check_branch
    %20 = sbr.rel (0) target = $region9
  $region8: #{_vae_forward.1} parent=0 // pred_region
    _
  $region9: #{_vae_forward.1} parent=0 // pred_fallthru
    _
  // Predicated region
  $region10: #{_vae_forward.1} parent=0 // pred_check
    _
  $region11: #{_vae_forward.1} parent=0 // pred_check_branch
    %22 = sbr.rel (0) target = $region13
  $region12: #{_vae_forward.1} parent=0 // pred_region
    _
  $region13: #{_vae_forward.1} parent=0 // pred_fallthru
    _
  // Predicated region
  $region14: #{_vae_forward.1} parent=0 // pred_check
    _
  $region15: #{_vae_forward.1} parent=0 // pred_check_branch
    %24 = sbr.rel (0) target = $region17
  $region16: #{_vae_forward.1} parent=0 // pred_region
    _
  $region17: #{_vae_forward.1} parent=0 // pred_fallthru
    _
  // Predicated region
  $region18: #{_vae_forward.1} parent=0 // pred_check
    _
  $region19: #{_vae_forward.1} parent=0 // pred_check_branch
    %26 = sbr.rel (0) target = $region21
  $region20: #{_vae_forward.1} parent=0 // pred_region
    _
  $region21: #{_vae_forward.1} parent=0 // pred_fallthru
    _
  // Predicated region
  $region22: #{_vae_forward.1} parent=0 // pred_check
    _
  $region23: #{_vae_forward.1} parent=0 // pred_check_branch
    %28 = sbr.rel (0) target = $region25
  $region24: #{_vae_forward.1} parent=0 // pred_region
    _
  $region25: #{_vae_forward.1} parent=0 // pred_fallthru
    _
  // Predicated region
  $region26: #{_vae_forward.1} parent=0 // pred_check
    _
  $region27: #{_vae_forward.1} parent=0 // pred_check_branch
    %30 = sbr.rel (0) target = $region29
  $region28: #{_vae_forward.1} parent=0 // pred_region
    _
  $region29: #{_vae_forward.1} parent=0 // pred_fallthru
    _
  // Predicated region
  $region30: #{_vae_forward.1} parent=0 // pred_check
    _
  $region31: #{_vae_forward.1} parent=0 // pred_check_branch
    %32 = sbr.rel (0) target = $region33
  $region32: #{_vae_forward.1} parent=0 // pred_region
    _
  $region33: #{_vae_forward.1} parent=0 // pred_fallthru
    _
  // Predicated region
  $region34: #{_vae_forward.1} parent=0 // pred_check
    _
  $region35: #{_vae_forward.1} parent=0 // pred_check_branch
    %34 = sbr.rel (0) target = $region37
  $region36: #{_vae_forward.1} parent=0 // pred_region
    _
  $region37: #{_vae_forward.1} parent=0 // pred_fallthru
    _
  // Predicated region
  $region38: #{_vae_forward.1} parent=0 // pred_check
    _
  $region39: #{_vae_forward.1} parent=0 // pred_check_branch
    %36 = sbr.rel (0) target = $region41
  $region40: #{_vae_forward.1} parent=0 // pred_region
    _
  $region41: #{_vae_forward.1} parent=0 // pred_fallthru
    _
  %v38 = vld [vmem:[%s0] sm:$0xff]
  %v39 = vld [vmem:[%s0 + $0x8] sm:$0xff]
  %v40 = vld [vmem:[%s0 + $0x10] sm:$0xff]
  %v41 = vld [vmem:[%s0 + $0x18] sm:$0xff]
  %v42 = vld [vmem:[%s0 + $0x20] sm:$0xff]
  %v43 = vld [vmem:[%s0 + $0x28] sm:$0xff]
  %v44 = vld [vmem:[%s0 + $0x30] sm:$0xff]
  %v45 = vld [vmem:[%s0 + $0x38] sm:$0xff]
  %v46 = vld [vmem:[%s0 + $0x40] sm:$0xff]
  %v47 = vld [vmem:[%s0 + $0x48] sm:$0xff]
  %v48 = vld [vmem:[%s0 + $0x50] sm:$0xff]
  %v49 = vld [vmem:[%s0 + $0x58] sm:$0xff]
  %v50 = vld [vmem:[%s0 + $0x60] sm:$0xff]
  %v51 = vld [vmem:[%s0 + $0x68] sm:$0xff]
  %v52 = vpack.c.bf16 %v45, %v38
  %v53 = vpack.c.bf16 %v46, %v39
  %v54 = vpack.c.bf16 %v47, %v40
  %v55 = vpack.c.bf16 %v48, %v41
  %v56 = vpack.c.bf16 %v49, %v42
  %v57 = vpack.c.bf16 %v50, %v43
  %v58 = vpack.c.bf16 %v51, %v44
  %v59 = vld [vmem:[%s2] sm:$0xff]
  %v60 = vld [vmem:[%s2 + $0x8] sm:$0xff]
  %v61 = vld [vmem:[%s2 + $0x10] sm:$0xff]
  %v62 = vld [vmem:[%s2 + $0x18] sm:$0xff]
  %v63 = vld [vmem:[%s2 + $0x20] sm:$0xff]
  %v64 = vld [vmem:[%s2 + $0x28] sm:$0xff]
  %v65 = vld [vmem:[%s2 + $0x30] sm:$0xff]
  %v66 = vld [vmem:[%s2 + $0x38] sm:$0xff]
  %v67 = vld [vmem:[%s2 + $0x40] sm:$0xff]
  %v68 = vld [vmem:[%s2 + $0x48] sm:$0xff]
  %v69 = vld [vmem:[%s2 + $0x50] sm:$0xff]
  %v70 = vld [vmem:[%s2 + $0x58] sm:$0xff]
  %v71 = vld [vmem:[%s2 + $0x60] sm:$0xff]
  %v72 = vld [vmem:[%s2 + $0x68] sm:$0xff]
  %v73 = vld [vmem:[%s2 + $0x70] sm:$0xff]
  %v74 = vld [vmem:[%s2 + $0x78] sm:$0xff]
  %v75 = vld [vmem:[%s2 + $0x80] sm:$0xff]
  %v76 = vld [vmem:[%s2 + $0x88] sm:$0xff]
  %v77 = vld [vmem:[%s2 + $0x90] sm:$0xff]
  %v78 = vld [vmem:[%s2 + $0x98] sm:$0xff]
  %v79 = vld [vmem:[%s2 + $0xa0] sm:$0xff]
  %v80 = vld [vmem:[%s2 + $0xa8] sm:$0xff]
  %v81 = vld [vmem:[%s2 + $0xb0] sm:$0xff]
  %v82 = vld [vmem:[%s2 + $0xb8] sm:$0xff]
  %v83 = vld [vmem:[%s2 + $0xc0] sm:$0xff]
  %v84 = vld [vmem:[%s2 + $0xc8] sm:$0xff]
  %v85 = vld [vmem:[%s2 + $0xd0] sm:$0xff]
  %v86 = vld [vmem:[%s2 + $0xd8] sm:$0xff]
  %v87 = vld [vmem:[%s2 + $0xe0] sm:$0xff]
  %v88 = vld [vmem:[%s2 + $0xe8] sm:$0xff]
  %v89 = vld [vmem:[%s2 + $0xf0] sm:$0xff]
  %v90 = vld [vmem:[%s2 + $0xf8] sm:$0xff]
  %v91 = vld [vmem:[%s2 + $0x100] sm:$0xff]
  %v92 = vld [vmem:[%s2 + $0x108] sm:$0xff]
  %v93 = vld [vmem:[%s2 + $0x110] sm:$0xff]
  %v94 = vld [vmem:[%s2 + $0x118] sm:$0xff]
  %v95 = vld [vmem:[%s2 + $0x120] sm:$0xff]
  %v96 = vld [vmem:[%s2 + $0x128] sm:$0xff]
  %v97 = vld [vmem:[%s2 + $0x130] sm:$0xff]
  %v98 = vld [vmem:[%s2 + $0x138] sm:$0xff]
  %v99 = vld [vmem:[%s2 + $0x140] sm:$0xff]
  %v100 = vld [vmem:[%s2 + $0x148] sm:$0xff]
  %v101 = vld [vmem:[%s2 + $0x150] sm:$0xff]
  %v102 = vld [vmem:[%s2 + $0x158] sm:$0xff]
  %v103 = vld [vmem:[%s2 + $0x160] sm:$0xff]
  %v104 = vld [vmem:[%s2 + $0x168] sm:$0xff]
  %v105 = vld [vmem:[%s2 + $0x170] sm:$0xff]
  %v106 = vld [vmem:[%s2 + $0x178] sm:$0xff]
  %v107 = vld [vmem:[%s2 + $0x180] sm:$0xff]
  %v108 = vld [vmem:[%s2 + $0x188] sm:$0xff]
  %v109 = vld [vmem:[%s2 + $0x190] sm:$0xff]
  %v110 = vld [vmem:[%s2 + $0x198] sm:$0xff]
  %v111 = vld [vmem:[%s2 + $0x1a0] sm:$0xff]
  %v112 = vld [vmem:[%s2 + $0x1a8] sm:$0xff]
  %v113 = vld [vmem:[%s2 + $0x1b0] sm:$0xff]
  %v114 = vld [vmem:[%s2 + $0x1b8] sm:$0xff]
  %v115 = vld [vmem:[%s2 + $0x1c0] sm:$0xff]
  %v116 = vld [vmem:[%s2 + $0x1c8] sm:$0xff]
  %v117 = vld [vmem:[%s2 + $0x1d0] sm:$0xff]
  %v118 = vld [vmem:[%s2 + $0x1d8] sm:$0xff]
  %v119 = vld [vmem:[%s2 + $0x1e0] sm:$0xff]
  %v120 = vld [vmem:[%s2 + $0x1e8] sm:$0xff]
  %v121 = vld [vmem:[%s2 + $0x1f0] sm:$0xff]
  %v122 = vld [vmem:[%s2 + $0x1f8] sm:$0xff]
  %v123 = vld [vmem:[%s2 + $0x200] sm:$0xff]
  %v124 = vld [vmem:[%s2 + $0x208] sm:$0xff]
  %v125 = vld [vmem:[%s2 + $0x210] sm:$0xff]
  %v126 = vld [vmem:[%s2 + $0x218] sm:$0xff]
  %v127 = vld [vmem:[%s2 + $0x220] sm:$0xff]
  %v128 = vld [vmem:[%s2 + $0x228] sm:$0xff]
  %v129 = vld [vmem:[%s2 + $0x230] sm:$0xff]
  %v130 = vld [vmem:[%s2 + $0x238] sm:$0xff]
  %v131 = vld [vmem:[%s2 + $0x240] sm:$0xff]
  %v132 = vld [vmem:[%s2 + $0x248] sm:$0xff]
  %v133 = vld [vmem:[%s2 + $0x250] sm:$0xff]
  %v134 = vld [vmem:[%s2 + $0x258] sm:$0xff]
  %v135 = vld [vmem:[%s2 + $0x260] sm:$0xff]
  %v136 = vld [vmem:[%s2 + $0x268] sm:$0xff]
  %v137 = vld [vmem:[%s2 + $0x270] sm:$0xff]
  %v138 = vld [vmem:[%s2 + $0x278] sm:$0xff]
  %v139 = vld [vmem:[%s2 + $0x280] sm:$0xff]
  %v140 = vld [vmem:[%s2 + $0x288] sm:$0xff]
  %v141 = vld [vmem:[%s2 + $0x290] sm:$0xff]
  %v142 = vld [vmem:[%s2 + $0x298] sm:$0xff]
  %v143 = vld [vmem:[%s2 + $0x2a0] sm:$0xff]
  %v144 = vld [vmem:[%s2 + $0x2a8] sm:$0xff]
  %v145 = vld [vmem:[%s2 + $0x2b0] sm:$0xff]
  %v146 = vld [vmem:[%s2 + $0x2b8] sm:$0xff]
  %v147 = vld [vmem:[%s2 + $0x2c0] sm:$0xff]
  %v148 = vld [vmem:[%s2 + $0x2c8] sm:$0xff]
  %v149 = vld [vmem:[%s2 + $0x2d0] sm:$0xff]
  %v150 = vld [vmem:[%s2 + $0x2d8] sm:$0xff]
  %v151 = vld [vmem:[%s2 + $0x2e0] sm:$0xff]
  %v152 = vld [vmem:[%s2 + $0x2e8] sm:$0xff]
  %v153 = vld [vmem:[%s2 + $0x2f0] sm:$0xff]
  %v154 = vld [vmem:[%s2 + $0x2f8] sm:$0xff]
  %v155 = vld [vmem:[%s2 + $0x300] sm:$0xff]
  %v156 = vld [vmem:[%s2 + $0x308] sm:$0xff]
  %v157 = vld [vmem:[%s3] sm:$0x3]
  %v159 = vperm.slane %v157, 0
  %v160 = vperm.slane %v157, 1
  %v261 = vunpack.c.l.b16 %v59
  %v262 = vunpack.c.h.b16 %v59
  %v263 = vunpack.c.l.b16 %v60
  %v264 = vunpack.c.h.b16 %v60
  %v265 = vunpack.c.l.b16 %v61
  %v266 = vunpack.c.h.b16 %v61
  %v267 = vunpack.c.l.b16 %v62
  %v268 = vunpack.c.h.b16 %v62
  %v269 = vunpack.c.l.b16 %v63
  %v270 = vunpack.c.h.b16 %v63
  %v271 = vunpack.c.l.b16 %v64
  %v272 = vunpack.c.h.b16 %v64
  %v273 = vunpack.c.l.b16 %v65
  %v274 = vunpack.c.h.b16 %v65
  %v275 = vunpack.c.l.b16 %v66
  %v276 = vunpack.c.h.b16 %v66
  %v277 = vunpack.c.l.b16 %v67
  %v278 = vunpack.c.h.b16 %v67
  %v279 = vunpack.c.l.b16 %v68
  %v280 = vunpack.c.h.b16 %v68
  %v281 = vunpack.c.l.b16 %v69
  %v282 = vunpack.c.h.b16 %v69
  %v283 = vunpack.c.l.b16 %v70
  %v284 = vunpack.c.h.b16 %v70
  %v285 = vunpack.c.l.b16 %v71
  %v286 = vunpack.c.h.b16 %v71
  %v287 = vunpack.c.l.b16 %v72
  %v288 = vunpack.c.h.b16 %v72
  %v289 = vunpack.c.l.b16 %v73
  %v290 = vunpack.c.h.b16 %v73
  %v291 = vunpack.c.l.b16 %v74
  %v292 = vunpack.c.h.b16 %v74
  %v293 = vunpack.c.l.b16 %v75
  %v294 = vunpack.c.h.b16 %v75
  %v295 = vunpack.c.l.b16 %v76
  %v296 = vunpack.c.h.b16 %v76
  %v297 = vunpack.c.l.b16 %v77
  %v298 = vunpack.c.h.b16 %v77
  %v299 = vunpack.c.l.b16 %v78
  %v300 = vunpack.c.h.b16 %v78
  %v301 = vunpack.c.l.b16 %v79
  %v302 = vunpack.c.h.b16 %v79
  %v303 = vunpack.c.l.b16 %v80
  %v304 = vunpack.c.h.b16 %v80
  %v305 = vunpack.c.l.b16 %v81
  %v306 = vunpack.c.h.b16 %v81
  %v307 = vunpack.c.l.b16 %v82
  %v308 = vunpack.c.h.b16 %v82
  %v309 = vunpack.c.l.b16 %v83
  %v310 = vunpack.c.h.b16 %v83
  %v311 = vunpack.c.l.b16 %v84
  %v312 = vunpack.c.h.b16 %v84
  %v313 = vunpack.c.l.b16 %v85
  %v314 = vunpack.c.h.b16 %v85
  %v315 = vunpack.c.l.b16 %v86
  %v316 = vunpack.c.h.b16 %v86
  %v317 = vunpack.c.l.b16 %v87
  %v318 = vunpack.c.h.b16 %v87
  %v319 = vunpack.c.l.b16 %v88
  %v320 = vunpack.c.h.b16 %v88
  %v321 = vunpack.c.l.b16 %v89
  %v322 = vunpack.c.h.b16 %v89
  %v323 = vunpack.c.l.b16 %v90
  %v324 = vunpack.c.h.b16 %v90
  %v325 = vunpack.c.l.b16 %v91
  %v326 = vunpack.c.h.b16 %v91
  %v327 = vunpack.c.l.b16 %v92
  %v328 = vunpack.c.h.b16 %v92
  %v329 = vunpack.c.l.b16 %v93
  %v330 = vunpack.c.h.b16 %v93
  %v331 = vunpack.c.l.b16 %v94
  %v332 = vunpack.c.h.b16 %v94
  %v333 = vunpack.c.l.b16 %v95
  %v334 = vunpack.c.h.b16 %v95
  %v335 = vunpack.c.l.b16 %v96
  %v336 = vunpack.c.h.b16 %v96
  %v337 = vunpack.c.l.b16 %v97
  %v338 = vunpack.c.h.b16 %v97
  %v339 = vunpack.c.l.b16 %v98
  %v340 = vunpack.c.h.b16 %v98
  %v341 = vunpack.c.l.b16 %v99
  %v342 = vunpack.c.h.b16 %v99
  %v343 = vunpack.c.l.b16 %v100
  %v344 = vunpack.c.h.b16 %v100
  %v345 = vunpack.c.l.b16 %v101
  %v346 = vunpack.c.h.b16 %v101
  %v347 = vunpack.c.l.b16 %v102
  %v348 = vunpack.c.h.b16 %v102
  %v349 = vunpack.c.l.b16 %v103
  %v350 = vunpack.c.h.b16 %v103
  %v351 = vunpack.c.l.b16 %v104
  %v352 = vunpack.c.h.b16 %v104
  %v353 = vunpack.c.l.b16 %v105
  %v354 = vunpack.c.h.b16 %v105
  %v355 = vunpack.c.l.b16 %v106
  %v356 = vunpack.c.h.b16 %v106
  %v357 = vunpack.c.l.b16 %v107
  %v358 = vunpack.c.h.b16 %v107
  %v359 = vunpack.c.l.b16 %v108
  %v360 = vunpack.c.h.b16 %v108
  %v361 = vunpack.c.l.b16 %v109
  %v362 = vunpack.c.h.b16 %v109
  %v363 = vunpack.c.l.b16 %v110
  %v364 = vunpack.c.h.b16 %v110
  %v365 = vunpack.c.l.b16 %v111
  %v366 = vunpack.c.h.b16 %v111
  %v367 = vunpack.c.l.b16 %v112
  %v368 = vunpack.c.h.b16 %v112
  %v369 = vunpack.c.l.b16 %v113
  %v370 = vunpack.c.h.b16 %v113
  %v371 = vunpack.c.l.b16 %v114
  %v372 = vunpack.c.h.b16 %v114
  %v373 = vunpack.c.l.b16 %v115
  %v374 = vunpack.c.h.b16 %v115
  %v375 = vunpack.c.l.b16 %v116
  %v376 = vunpack.c.h.b16 %v116
  %v377 = vunpack.c.l.b16 %v117
  %v378 = vunpack.c.h.b16 %v117
  %v379 = vunpack.c.l.b16 %v118
  %v380 = vunpack.c.h.b16 %v118
  %v381 = vunpack.c.l.b16 %v119
  %v382 = vunpack.c.h.b16 %v119
  %v383 = vunpack.c.l.b16 %v120
  %v384 = vunpack.c.h.b16 %v120
  %v385 = vunpack.c.l.b16 %v121
  %v386 = vunpack.c.h.b16 %v121
  %v387 = vunpack.c.l.b16 %v122
  %v388 = vunpack.c.h.b16 %v122
  %v389 = vunpack.c.l.b16 %v123
  %v390 = vunpack.c.h.b16 %v123
  %v391 = vunpack.c.l.b16 %v124
  %v392 = vunpack.c.h.b16 %v124
  %v393 = vunpack.c.l.b16 %v125
  %v394 = vunpack.c.h.b16 %v125
  %v395 = vunpack.c.l.b16 %v126
  %v396 = vunpack.c.h.b16 %v126
  %v397 = vunpack.c.l.b16 %v127
  %v398 = vunpack.c.h.b16 %v127
  %v399 = vunpack.c.l.b16 %v128
  %v400 = vunpack.c.h.b16 %v128
  %v401 = vunpack.c.l.b16 %v129
  %v402 = vunpack.c.h.b16 %v129
  %v403 = vunpack.c.l.b16 %v130
  %v404 = vunpack.c.h.b16 %v130
  %v405 = vunpack.c.l.b16 %v131
  %v406 = vunpack.c.h.b16 %v131
  %v407 = vunpack.c.l.b16 %v132
  %v408 = vunpack.c.h.b16 %v132
  %v409 = vunpack.c.l.b16 %v133
  %v410 = vunpack.c.h.b16 %v133
  %v411 = vunpack.c.l.b16 %v134
  %v412 = vunpack.c.h.b16 %v134
  %v413 = vunpack.c.l.b16 %v135
  %v414 = vunpack.c.h.b16 %v135
  %v415 = vunpack.c.l.b16 %v136
  %v416 = vunpack.c.h.b16 %v136
  %v417 = vunpack.c.l.b16 %v137
  %v418 = vunpack.c.h.b16 %v137
  %v419 = vunpack.c.l.b16 %v138
  %v420 = vunpack.c.h.b16 %v138
  %v421 = vunpack.c.l.b16 %v139
  %v422 = vunpack.c.h.b16 %v139
  %v423 = vunpack.c.l.b16 %v140
  %v424 = vunpack.c.h.b16 %v140
  %v425 = vunpack.c.l.b16 %v141
  %v426 = vunpack.c.h.b16 %v141
  %v427 = vunpack.c.l.b16 %v142
  %v428 = vunpack.c.h.b16 %v142
  %v429 = vunpack.c.l.b16 %v143
  %v430 = vunpack.c.h.b16 %v143
  %v431 = vunpack.c.l.b16 %v144
  %v432 = vunpack.c.h.b16 %v144
  %v433 = vunpack.c.l.b16 %v145
  %v434 = vunpack.c.h.b16 %v145
  %v435 = vunpack.c.l.b16 %v146
  %v436 = vunpack.c.h.b16 %v146
  %v437 = vunpack.c.l.b16 %v147
  %v438 = vunpack.c.h.b16 %v147
  %v439 = vunpack.c.l.b16 %v148
  %v440 = vunpack.c.h.b16 %v148
  %v441 = vunpack.c.l.b16 %v149
  %v442 = vunpack.c.h.b16 %v149
  %v443 = vunpack.c.l.b16 %v150
  %v444 = vunpack.c.h.b16 %v150
  %v445 = vunpack.c.l.b16 %v151
  %v446 = vunpack.c.h.b16 %v151
  %v447 = vunpack.c.l.b16 %v152
  %v448 = vunpack.c.h.b16 %v152
  %v449 = vunpack.c.l.b16 %v153
  %v450 = vunpack.c.h.b16 %v153
  %v451 = vunpack.c.l.b16 %v154
  %v452 = vunpack.c.h.b16 %v154
  %v453 = vunpack.c.l.b16 %v155
  %v454 = vunpack.c.h.b16 %v155
  %v455 = vunpack.c.l.b16 %v156
  %v456 = vunpack.c.h.b16 %v156
  %v457 = vpack.c.b16 %v263, %v261
  %v458 = vpack.c.b16 %v264, %v262
  %v459 = vpack.c.b16 %v267, %v265
  %v460 = vpack.c.b16 %v268, %v266
  %v461 = vpack.c.b16 %v271, %v269
  %v462 = vpack.c.b16 %v272, %v270
  %v463 = vpack.c.b16 %v275, %v273
  %v464 = vpack.c.b16 %v276, %v274
  %v465 = vpack.c.b16 %v279, %v277
  %v466 = vpack.c.b16 %v280, %v278
  %v467 = vpack.c.b16 %v283, %v281
  %v468 = vpack.c.b16 %v284, %v282
  %v469 = vpack.c.b16 %v287, %v285
  %v470 = vpack.c.b16 %v288, %v286
  %v471 = vpack.c.b16 %v291, %v289
  %v472 = vpack.c.b16 %v292, %v290
  %v473 = vpack.c.b16 %v295, %v293
  %v474 = vpack.c.b16 %v296, %v294
  %v475 = vpack.c.b16 %v299, %v297
  %v476 = vpack.c.b16 %v300, %v298
  %v477 = vpack.c.b16 %v303, %v301
  %v478 = vpack.c.b16 %v304, %v302
  %v479 = vpack.c.b16 %v307, %v305
  %v480 = vpack.c.b16 %v308, %v306
  %v481 = vpack.c.b16 %v311, %v309
  %v482 = vpack.c.b16 %v312, %v310
  %v483 = vpack.c.b16 %v315, %v313
  %v484 = vpack.c.b16 %v316, %v314
  %v485 = vpack.c.b16 %v319, %v317
  %v486 = vpack.c.b16 %v320, %v318
  %v487 = vpack.c.b16 %v323, %v321
  %v488 = vpack.c.b16 %v324, %v322
  %v489 = vpack.c.b16 %v327, %v325
  %v490 = vpack.c.b16 %v328, %v326
  %v491 = vpack.c.b16 %v331, %v329
  %v492 = vpack.c.b16 %v332, %v330
  %v493 = vpack.c.b16 %v335, %v333
  %v494 = vpack.c.b16 %v336, %v334
  %v495 = vpack.c.b16 %v339, %v337
  %v496 = vpack.c.b16 %v340, %v338
  %v497 = vpack.c.b16 %v343, %v341
  %v498 = vpack.c.b16 %v344, %v342
  %v499 = vpack.c.b16 %v347, %v345
  %v500 = vpack.c.b16 %v348, %v346
  %v501 = vpack.c.b16 %v351, %v349
  %v502 = vpack.c.b16 %v352, %v350
  %v503 = vpack.c.b16 %v355, %v353
  %v504 = vpack.c.b16 %v356, %v354
  %v505 = vpack.c.b16 %v359, %v357
  %v506 = vpack.c.b16 %v360, %v358
  %v507 = vpack.c.b16 %v363, %v361
  %v508 = vpack.c.b16 %v364, %v362
  %v509 = vpack.c.b16 %v367, %v365
  %v510 = vpack.c.b16 %v368, %v366
  %v511 = vpack.c.b16 %v371, %v369
  %v512 = vpack.c.b16 %v372, %v370
  %v513 = vpack.c.b16 %v375, %v373
  %v514 = vpack.c.b16 %v376, %v374
  %v515 = vpack.c.b16 %v379, %v377
  %v516 = vpack.c.b16 %v380, %v378
  %v517 = vpack.c.b16 %v383, %v381
  %v518 = vpack.c.b16 %v384, %v382
  %v519 = vpack.c.b16 %v387, %v385
  %v520 = vpack.c.b16 %v388, %v386
  %v521 = vpack.c.b16 %v391, %v389
  %v522 = vpack.c.b16 %v392, %v390
  %v523 = vpack.c.b16 %v395, %v393
  %v524 = vpack.c.b16 %v396, %v394
  %v525 = vpack.c.b16 %v399, %v397
  %v526 = vpack.c.b16 %v400, %v398
  %v527 = vpack.c.b16 %v403, %v401
  %v528 = vpack.c.b16 %v404, %v402
  %v529 = vpack.c.b16 %v407, %v405
  %v530 = vpack.c.b16 %v408, %v406
  %v531 = vpack.c.b16 %v411, %v409
  %v532 = vpack.c.b16 %v412, %v410
  %v533 = vpack.c.b16 %v415, %v413
  %v534 = vpack.c.b16 %v416, %v414
  %v535 = vpack.c.b16 %v419, %v417
  %v536 = vpack.c.b16 %v420, %v418
  %v537 = vpack.c.b16 %v423, %v421
  %v538 = vpack.c.b16 %v424, %v422
  %v539 = vpack.c.b16 %v427, %v425
  %v540 = vpack.c.b16 %v428, %v426
  %v541 = vpack.c.b16 %v431, %v429
  %v542 = vpack.c.b16 %v432, %v430
  %v543 = vpack.c.b16 %v435, %v433
  %v544 = vpack.c.b16 %v436, %v434
  %v545 = vpack.c.b16 %v439, %v437
  %v546 = vpack.c.b16 %v440, %v438
  %v547 = vpack.c.b16 %v443, %v441
  %v548 = vpack.c.b16 %v444, %v442
  %v549 = vpack.c.b16 %v447, %v445
  %v550 = vpack.c.b16 %v448, %v446
  %v551 = vpack.c.b16 %v451, %v449
  %v552 = vpack.c.b16 %v452, %v450
  %v553 = vpack.c.b16 %v455, %v453
  %v554 = vpack.c.b16 %v456, %v454
  %vm653 = vcmask 130048
  %v655 = vsel %vm653, %v58, 0
  %657 = vmatpush.bf16.msra.mxu0 %v471
  %658 = vmatpush.bf16.msra.mxu0 %v469
  %659 = vmatpush.bf16.msra.mxu0 %v467
  %660 = vmatpush.bf16.msra.mxu0 %v465
  %661 = vmatpush.bf16.msra.mxu0 %v463
  %662 = vmatpush.bf16.msra.mxu0 %v461
  %663 = vmatpush.bf16.msra.mxu0 %v459
  %664 = vmatpush.bf16.msra.mxu0 %v457
  %665 = vmatmul.bf16.gmra.mxu0 %v52
  %v666 = vpop.f32.mrf.mxu0
  %v667 = vadd.f32 %v159, %v666
  %v668 = vpop.f32.mrf.mxu0
  %v669 = vadd.f32 %v159, %v668
  %670 = vdwg.mxu0
  %671 = vmatpush.bf16.msra.mxu0 %v487
  %672 = vmatpush.bf16.msra.mxu0 %v485
  %673 = vmatpush.bf16.msra.mxu0 %v483
  %674 = vmatpush.bf16.msra.mxu0 %v481
  %675 = vmatpush.bf16.msra.mxu0 %v479
  %676 = vmatpush.bf16.msra.mxu0 %v477
  %677 = vmatpush.bf16.msra.mxu0 %v475
  %678 = vmatpush.bf16.msra.mxu0 %v473
  %679 = vmatmul.bf16.gmra.mxu0 %v53
  %v680 = vpop.f32.mrf.mxu0
  %v681 = vadd.f32 %v667, %v680
  %v682 = vpop.f32.mrf.mxu0
  %v683 = vadd.f32 %v669, %v682
  %684 = vdwg.mxu0
  %685 = vmatpush.bf16.msra.mxu0 %v503
  %686 = vmatpush.bf16.msra.mxu0 %v501
  %687 = vmatpush.bf16.msra.mxu0 %v499
  %688 = vmatpush.bf16.msra.mxu0 %v497
  %689 = vmatpush.bf16.msra.mxu0 %v495
  %690 = vmatpush.bf16.msra.mxu0 %v493
  %691 = vmatpush.bf16.msra.mxu0 %v491
  %692 = vmatpush.bf16.msra.mxu0 %v489
  %693 = vmatmul.bf16.gmra.mxu0 %v54
  %v694 = vpop.f32.mrf.mxu0
  %v695 = vadd.f32 %v681, %v694
  %v696 = vpop.f32.mrf.mxu0
  %v697 = vadd.f32 %v683, %v696
  %698 = vdwg.mxu0
  %699 = vmatpush.bf16.msra.mxu0 %v519
  %700 = vmatpush.bf16.msra.mxu0 %v517
  %701 = vmatpush.bf16.msra.mxu0 %v515
  %702 = vmatpush.bf16.msra.mxu0 %v513
  %703 = vmatpush.bf16.msra.mxu0 %v511
  %704 = vmatpush.bf16.msra.mxu0 %v509
  %705 = vmatpush.bf16.msra.mxu0 %v507
  %706 = vmatpush.bf16.msra.mxu0 %v505
  %707 = vmatmul.bf16.gmra.mxu0 %v55
  %v708 = vpop.f32.mrf.mxu0
  %v709 = vadd.f32 %v695, %v708
  %v710 = vpop.f32.mrf.mxu0
  %v711 = vadd.f32 %v697, %v710
  %712 = vdwg.mxu0
  %713 = vmatpush.bf16.msra.mxu0 %v535
  %714 = vmatpush.bf16.msra.mxu0 %v533
  %715 = vmatpush.bf16.msra.mxu0 %v531
  %716 = vmatpush.bf16.msra.mxu0 %v529
  %717 = vmatpush.bf16.msra.mxu0 %v527
  %718 = vmatpush.bf16.msra.mxu0 %v525
  %719 = vmatpush.bf16.msra.mxu0 %v523
  %720 = vmatpush.bf16.msra.mxu0 %v521
  %721 = vmatmul.bf16.gmra.mxu0 %v56
  %v722 = vpop.f32.mrf.mxu0
  %v723 = vadd.f32 %v709, %v722
  %v724 = vpop.f32.mrf.mxu0
  %v725 = vadd.f32 %v711, %v724
  %726 = vdwg.mxu0
  %727 = vmatpush.bf16.msra.mxu0 %v551
  %728 = vmatpush.bf16.msra.mxu0 %v549
  %729 = vmatpush.bf16.msra.mxu0 %v547
  %730 = vmatpush.bf16.msra.mxu0 %v545
  %731 = vmatpush.bf16.msra.mxu0 %v543
  %732 = vmatpush.bf16.msra.mxu0 %v541
  %733 = vmatpush.bf16.msra.mxu0 %v539
  %734 = vmatpush.bf16.msra.mxu0 %v537
  %735 = vmatmul.bf16.gmra.mxu0 %v57
  %v736 = vpop.f32.mrf.mxu0
  %v737 = vadd.f32 %v723, %v736
  %v738 = vpop.f32.mrf.mxu0
  %v739 = vadd.f32 %v725, %v738
  %740 = vdwg.mxu0
  %741 = vmatpush.bf16.msra.mxu0 0
  %742 = vmatpush.bf16.msra.mxu0 0
  %743 = vmatpush.bf16.msra.mxu0 0
  %744 = vmatpush.bf16.msra.mxu0 0
  %745 = vmatpush.bf16.msra.mxu0 0
  %746 = vmatpush.bf16.msra.mxu0 0
  %747 = vmatpush.bf16.msra.mxu0 0
  %748 = vmatpush.bf16.msra.mxu0 %v553
  %749 = vmatmul.bf16.gmra.mxu0 %v655
  %v750 = vpop.f32.mrf.mxu0
  %v751 = vadd.f32 %v737, %v750
  %v752 = vpop.f32.mrf.mxu0
  %v753 = vadd.f32 %v739, %v752
  %754 = vdwg.mxu0
  %755 = vmatpush.bf16.msra.mxu0 %v472
  %756 = vmatpush.bf16.msra.mxu0 %v470
  %757 = vmatpush.bf16.msra.mxu0 %v468
  %758 = vmatpush.bf16.msra.mxu0 %v466
  %759 = vmatpush.bf16.msra.mxu0 %v464
  %760 = vmatpush.bf16.msra.mxu0 %v462
  %761 = vmatpush.bf16.msra.mxu0 %v460
  %762 = vmatpush.bf16.msra.mxu0 %v458
  %763 = vmatmul.bf16.gmra.mxu0 %v52
  %v764 = vpop.f32.mrf.mxu0
  %v765 = vadd.f32 %v160, %v764
  %v766 = vpop.f32.mrf.mxu0
  %v767 = vadd.f32 %v160, %v766
  %768 = vdwg.mxu0
  %769 = vmatpush.bf16.msra.mxu0 %v488
  %770 = vmatpush.bf16.msra.mxu0 %v486
  %771 = vmatpush.bf16.msra.mxu0 %v484
  %772 = vmatpush.bf16.msra.mxu0 %v482
  %773 = vmatpush.bf16.msra.mxu0 %v480
  %774 = vmatpush.bf16.msra.mxu0 %v478
  %775 = vmatpush.bf16.msra.mxu0 %v476
  %776 = vmatpush.bf16.msra.mxu0 %v474
  %777 = vmatmul.bf16.gmra.mxu0 %v53
  %v778 = vpop.f32.mrf.mxu0
  %v779 = vadd.f32 %v765, %v778
  %v780 = vpop.f32.mrf.mxu0
  %v781 = vadd.f32 %v767, %v780
  %782 = vdwg.mxu0
  %783 = vmatpush.bf16.msra.mxu0 %v504
  %784 = vmatpush.bf16.msra.mxu0 %v502
  %785 = vmatpush.bf16.msra.mxu0 %v500
  %786 = vmatpush.bf16.msra.mxu0 %v498
  %787 = vmatpush.bf16.msra.mxu0 %v496
  %788 = vmatpush.bf16.msra.mxu0 %v494
  %789 = vmatpush.bf16.msra.mxu0 %v492
  %790 = vmatpush.bf16.msra.mxu0 %v490
  %791 = vmatmul.bf16.gmra.mxu0 %v54
  %v792 = vpop.f32.mrf.mxu0
  %v793 = vadd.f32 %v779, %v792
  %v794 = vpop.f32.mrf.mxu0
  %v795 = vadd.f32 %v781, %v794
  %796 = vdwg.mxu0
  %797 = vmatpush.bf16.msra.mxu0 %v520
  %798 = vmatpush.bf16.msra.mxu0 %v518
  %799 = vmatpush.bf16.msra.mxu0 %v516
  %800 = vmatpush.bf16.msra.mxu0 %v514
  %801 = vmatpush.bf16.msra.mxu0 %v512
  %802 = vmatpush.bf16.msra.mxu0 %v510
  %803 = vmatpush.bf16.msra.mxu0 %v508
  %804 = vmatpush.bf16.msra.mxu0 %v506
  %805 = vmatmul.bf16.gmra.mxu0 %v55
  %v806 = vpop.f32.mrf.mxu0
  %v807 = vadd.f32 %v793, %v806
  %v808 = vpop.f32.mrf.mxu0
  %v809 = vadd.f32 %v795, %v808
  %810 = vdwg.mxu0
  %811 = vmatpush.bf16.msra.mxu0 %v536
  %812 = vmatpush.bf16.msra.mxu0 %v534
  %813 = vmatpush.bf16.msra.mxu0 %v532
  %814 = vmatpush.bf16.msra.mxu0 %v530
  %815 = vmatpush.bf16.msra.mxu0 %v528
  %816 = vmatpush.bf16.msra.mxu0 %v526
  %817 = vmatpush.bf16.msra.mxu0 %v524
  %818 = vmatpush.bf16.msra.mxu0 %v522
  %819 = vmatmul.bf16.gmra.mxu0 %v56
  %v820 = vpop.f32.mrf.mxu0
  %v821 = vadd.f32 %v807, %v820
  %v822 = vpop.f32.mrf.mxu0
  %v823 = vadd.f32 %v809, %v822
  %824 = vdwg.mxu0
  %825 = vmatpush.bf16.msra.mxu0 %v552
  %826 = vmatpush.bf16.msra.mxu0 %v550
  %827 = vmatpush.bf16.msra.mxu0 %v548
  %828 = vmatpush.bf16.msra.mxu0 %v546
  %829 = vmatpush.bf16.msra.mxu0 %v544
  %830 = vmatpush.bf16.msra.mxu0 %v542
  %831 = vmatpush.bf16.msra.mxu0 %v540
  %832 = vmatpush.bf16.msra.mxu0 %v538
  %833 = vmatmul.bf16.gmra.mxu0 %v57
  %v834 = vpop.f32.mrf.mxu0
  %v835 = vadd.f32 %v821, %v834
  %v836 = vpop.f32.mrf.mxu0
  %v837 = vadd.f32 %v823, %v836
  %838 = vdwg.mxu0
  %839 = vmatpush.bf16.msra.mxu0 0
  %840 = vmatpush.bf16.msra.mxu0 0
  %841 = vmatpush.bf16.msra.mxu0 0
  %842 = vmatpush.bf16.msra.mxu0 0
  %843 = vmatpush.bf16.msra.mxu0 0
  %844 = vmatpush.bf16.msra.mxu0 0
  %845 = vmatpush.bf16.msra.mxu0 0
  %846 = vmatpush.bf16.msra.mxu0 %v554
  %847 = vmatmul.bf16.gmra.mxu0 %v655
  %v848 = vpop.f32.mrf.mxu0
  %v849 = vadd.f32 %v835, %v848
  %v850 = vpop.f32.mrf.mxu0
  %v851 = vadd.f32 %v837, %v850
  %852 = vdwg.mxu0
  %v853 = vmax.f32 %v751, 0.0
  %v854 = vmax.f32 %v849, 0.0
  %v855 = vmax.f32 %v753, 0.0
  %v856 = vmax.f32 %v851, 0.0
  %v857 = vpack.c.bf16 %v855, %v853
  %v858 = vpack.c.bf16 %v856, %v854
  %v859 = vld [vmem:[%s4] sm:$0xff]
  %v860 = vld [vmem:[%s4 + $0x8] sm:$0xff]
  %v861 = vld [vmem:[%s4 + $0x10] sm:$0xff]
  %v862 = vld [vmem:[%s4 + $0x18] sm:$0xff]
  %v863 = vld [vmem:[%s4 + $0x20] sm:$0xff]
  %v864 = vld [vmem:[%s4 + $0x28] sm:$0xff]
  %v865 = vld [vmem:[%s4 + $0x30] sm:$0xff]
  %v866 = vld [vmem:[%s4 + $0x38] sm:$0xff]
  %v867 = vld [vmem:[%s4 + $0x40] sm:$0xff]
  %v868 = vld [vmem:[%s4 + $0x48] sm:$0xff]
  %v869 = vld [vmem:[%s4 + $0x50] sm:$0xff]
  %v870 = vld [vmem:[%s4 + $0x58] sm:$0xff]
  %v871 = vld [vmem:[%s4 + $0x60] sm:$0xff]
  %v872 = vld [vmem:[%s4 + $0x68] sm:$0xff]
  %v873 = vld [vmem:[%s4 + $0x70] sm:$0xff]
  %v874 = vld [vmem:[%s4 + $0x78] sm:$0xff]
  %v875 = vld [vmem:[%s4 + $0x80] sm:$0xff]
  %v876 = vld [vmem:[%s4 + $0x88] sm:$0xff]
  %v877 = vld [vmem:[%s4 + $0x90] sm:$0xff]
  %v878 = vld [vmem:[%s4 + $0x98] sm:$0xff]
  %v879 = vld [vmem:[%s4 + $0xa0] sm:$0xff]
  %v880 = vld [vmem:[%s4 + $0xa8] sm:$0xff]
  %v881 = vld [vmem:[%s4 + $0xb0] sm:$0xff]
  %v882 = vld [vmem:[%s4 + $0xb8] sm:$0xff]
  %v883 = vld [vmem:[%s4 + $0xc0] sm:$0xff]
  %v884 = vld [vmem:[%s4 + $0xc8] sm:$0xff]
  %v885 = vld [vmem:[%s4 + $0xd0] sm:$0xff]
  %v886 = vld [vmem:[%s4 + $0xd8] sm:$0xff]
  %v887 = vld [vmem:[%s4 + $0xe0] sm:$0xff]
  %v888 = vld [vmem:[%s4 + $0xe8] sm:$0xff]
  %v889 = vld [vmem:[%s4 + $0xf0] sm:$0xff]
  %v890 = vld [vmem:[%s4 + $0xf8] sm:$0xff]
  %v891 = vld [vmem:[%s5] sm:$0x3]
  %v893 = vperm.slane %v891, 0
  %v894 = vperm.slane %v891, 1
  %v929 = vunpack.c.l.b16 %v859
  %v930 = vunpack.c.h.b16 %v859
  %v931 = vunpack.c.l.b16 %v860
  %v932 = vunpack.c.h.b16 %v860
  %v933 = vunpack.c.l.b16 %v861
  %v934 = vunpack.c.h.b16 %v861
  %v935 = vunpack.c.l.b16 %v862
  %v936 = vunpack.c.h.b16 %v862
  %v937 = vunpack.c.l.b16 %v863
  %v938 = vunpack.c.h.b16 %v863
  %v939 = vunpack.c.l.b16 %v864
  %v940 = vunpack.c.h.b16 %v864
  %v941 = vunpack.c.l.b16 %v865
  %v942 = vunpack.c.h.b16 %v865
  %v943 = vunpack.c.l.b16 %v866
  %v944 = vunpack.c.h.b16 %v866
  %v945 = vunpack.c.l.b16 %v867
  %v946 = vunpack.c.h.b16 %v867
  %v947 = vunpack.c.l.b16 %v868
  %v948 = vunpack.c.h.b16 %v868
  %v949 = vunpack.c.l.b16 %v869
  %v950 = vunpack.c.h.b16 %v869
  %v951 = vunpack.c.l.b16 %v870
  %v952 = vunpack.c.h.b16 %v870
  %v953 = vunpack.c.l.b16 %v871
  %v954 = vunpack.c.h.b16 %v871
  %v955 = vunpack.c.l.b16 %v872
  %v956 = vunpack.c.h.b16 %v872
  %v957 = vunpack.c.l.b16 %v873
  %v958 = vunpack.c.h.b16 %v873
  %v959 = vunpack.c.l.b16 %v874
  %v960 = vunpack.c.h.b16 %v874
  %v961 = vunpack.c.l.b16 %v875
  %v962 = vunpack.c.h.b16 %v875
  %v963 = vunpack.c.l.b16 %v876
  %v964 = vunpack.c.h.b16 %v876
  %v965 = vunpack.c.l.b16 %v877
  %v966 = vunpack.c.h.b16 %v877
  %v967 = vunpack.c.l.b16 %v878
  %v968 = vunpack.c.h.b16 %v878
  %v969 = vunpack.c.l.b16 %v879
  %v970 = vunpack.c.h.b16 %v879
  %v971 = vunpack.c.l.b16 %v880
  %v972 = vunpack.c.h.b16 %v880
  %v973 = vunpack.c.l.b16 %v881
  %v974 = vunpack.c.h.b16 %v881
  %v975 = vunpack.c.l.b16 %v882
  %v976 = vunpack.c.h.b16 %v882
  %v977 = vunpack.c.l.b16 %v883
  %v978 = vunpack.c.h.b16 %v883
  %v979 = vunpack.c.l.b16 %v884
  %v980 = vunpack.c.h.b16 %v884
  %v981 = vunpack.c.l.b16 %v885
  %v982 = vunpack.c.h.b16 %v885
  %v983 = vunpack.c.l.b16 %v886
  %v984 = vunpack.c.h.b16 %v886
  %v985 = vunpack.c.l.b16 %v887
  %v986 = vunpack.c.h.b16 %v887
  %v987 = vunpack.c.l.b16 %v888
  %v988 = vunpack.c.h.b16 %v888
  %v989 = vunpack.c.l.b16 %v889
  %v990 = vunpack.c.h.b16 %v889
  %v991 = vunpack.c.l.b16 %v890
  %v992 = vunpack.c.h.b16 %v890
  %v993 = vpack.c.b16 %v931, %v929
  %v994 = vpack.c.b16 %v932, %v930
  %v995 = vpack.c.b16 %v935, %v933
  %v996 = vpack.c.b16 %v936, %v934
  %v997 = vpack.c.b16 %v939, %v937
  %v998 = vpack.c.b16 %v940, %v938
  %v999 = vpack.c.b16 %v943, %v941
  %v1000 = vpack.c.b16 %v944, %v942
  %v1001 = vpack.c.b16 %v947, %v945
  %v1002 = vpack.c.b16 %v948, %v946
  %v1003 = vpack.c.b16 %v951, %v949
  %v1004 = vpack.c.b16 %v952, %v950
  %v1005 = vpack.c.b16 %v955, %v953
  %v1006 = vpack.c.b16 %v956, %v954
  %v1007 = vpack.c.b16 %v959, %v957
  %v1008 = vpack.c.b16 %v960, %v958
  %v1009 = vpack.c.b16 %v963, %v961
  %v1010 = vpack.c.b16 %v964, %v962
  %v1011 = vpack.c.b16 %v967, %v965
  %v1012 = vpack.c.b16 %v968, %v966
  %v1013 = vpack.c.b16 %v971, %v969
  %v1014 = vpack.c.b16 %v972, %v970
  %v1015 = vpack.c.b16 %v975, %v973
  %v1016 = vpack.c.b16 %v976, %v974
  %v1017 = vpack.c.b16 %v979, %v977
  %v1018 = vpack.c.b16 %v980, %v978
  %v1019 = vpack.c.b16 %v983, %v981
  %v1020 = vpack.c.b16 %v984, %v982
  %v1021 = vpack.c.b16 %v987, %v985
  %v1022 = vpack.c.b16 %v988, %v986
  %v1023 = vpack.c.b16 %v991, %v989
  %v1024 = vpack.c.b16 %v992, %v990
  %1057 = vmatpush.bf16.msra.mxu0 %v1007
  %1058 = vmatpush.bf16.msra.mxu0 %v1005
  %1059 = vmatpush.bf16.msra.mxu0 %v1003
  %1060 = vmatpush.bf16.msra.mxu0 %v1001
  %1061 = vmatpush.bf16.msra.mxu0 %v999
  %1062 = vmatpush.bf16.msra.mxu0 %v997
  %1063 = vmatpush.bf16.msra.mxu0 %v995
  %1064 = vmatpush.bf16.msra.mxu0 %v993
  %1065 = vmatmul.bf16.gmra.mxu0 %v857
  %v1066 = vpop.f32.mrf.mxu0
  %v1067 = vadd.f32 %v893, %v1066
  %v1068 = vpop.f32.mrf.mxu0
  %v1069 = vadd.f32 %v893, %v1068
  %1070 = vdwg.mxu0
  %1071 = vmatpush.bf16.msra.mxu0 %v1023
  %1072 = vmatpush.bf16.msra.mxu0 %v1021
  %1073 = vmatpush.bf16.msra.mxu0 %v1019
  %1074 = vmatpush.bf16.msra.mxu0 %v1017
  %1075 = vmatpush.bf16.msra.mxu0 %v1015
  %1076 = vmatpush.bf16.msra.mxu0 %v1013
  %1077 = vmatpush.bf16.msra.mxu0 %v1011
  %1078 = vmatpush.bf16.msra.mxu0 %v1009
  %1079 = vmatmul.bf16.gmra.mxu0 %v858
  %v1080 = vpop.f32.mrf.mxu0
  %v1081 = vadd.f32 %v1067, %v1080
  %v1082 = vpop.f32.mrf.mxu0
  %v1083 = vadd.f32 %v1069, %v1082
  %1084 = vdwg.mxu0
  %1085 = vmatpush.bf16.msra.mxu0 %v1008
  %1086 = vmatpush.bf16.msra.mxu0 %v1006
  %1087 = vmatpush.bf16.msra.mxu0 %v1004
  %1088 = vmatpush.bf16.msra.mxu0 %v1002
  %1089 = vmatpush.bf16.msra.mxu0 %v1000
  %1090 = vmatpush.bf16.msra.mxu0 %v998
  %1091 = vmatpush.bf16.msra.mxu0 %v996
  %1092 = vmatpush.bf16.msra.mxu0 %v994
  %1093 = vmatmul.bf16.gmra.mxu0 %v857
  %v1094 = vpop.f32.mrf.mxu0
  %v1095 = vadd.f32 %v894, %v1094
  %v1096 = vpop.f32.mrf.mxu0
  %v1097 = vadd.f32 %v894, %v1096
  %1098 = vdwg.mxu0
  %1099 = vmatpush.bf16.msra.mxu0 %v1024
  %1100 = vmatpush.bf16.msra.mxu0 %v1022
  %1101 = vmatpush.bf16.msra.mxu0 %v1020
  %1102 = vmatpush.bf16.msra.mxu0 %v1018
  %1103 = vmatpush.bf16.msra.mxu0 %v1016
  %1104 = vmatpush.bf16.msra.mxu0 %v1014
  %1105 = vmatpush.bf16.msra.mxu0 %v1012
  %1106 = vmatpush.bf16.msra.mxu0 %v1010
  %1107 = vmatmul.bf16.gmra.mxu0 %v858
  %v1108 = vpop.f32.mrf.mxu0
  %v1109 = vadd.f32 %v1095, %v1108
  %v1110 = vpop.f32.mrf.mxu0
  %v1111 = vadd.f32 %v1097, %v1110
  %1112 = vdwg.mxu0
  %v1113 = vmul.f32 %v1109, 1.442695
  %v1114 = vpow.pop %v1113
  %v1115 = vmul.f32 %v1111, 1.442695
  %v1116 = vpow.pop %v1115
  %v1117 = vld [vmem:[%s1] sm:$0xff]
  %v1118 = vld [vmem:[%s1 + $0x8] sm:$0xff]
  %v1119 = vmul.f32 %v1114, %v1117
  %v1120 = vmul.f32 %v1116, %v1118
  %v1121 = vadd.f32 %v1081, %v1119
  %v1122 = vadd.f32 %v1083, %v1120
  %v1123 = vpack.c.bf16 %v1122, %v1121
  %v1124 = vld [vmem:[%s6] sm:$0xff]
  %v1125 = vld [vmem:[%s6 + $0x8] sm:$0xff]
  %v1126 = vld [vmem:[%s6 + $0x10] sm:$0xff]
  %v1127 = vld [vmem:[%s6 + $0x18] sm:$0xff]
  %v1128 = vld [vmem:[%s6 + $0x20] sm:$0xff]
  %v1129 = vld [vmem:[%s6 + $0x28] sm:$0xff]
  %v1130 = vld [vmem:[%s6 + $0x30] sm:$0xff]
  %v1131 = vld [vmem:[%s6 + $0x38] sm:$0xff]
  %v1132 = vld [vmem:[%s6 + $0x40] sm:$0xff]
  %v1133 = vld [vmem:[%s6 + $0x48] sm:$0xff]
  %v1134 = vld [vmem:[%s6 + $0x50] sm:$0xff]
  %v1135 = vld [vmem:[%s6 + $0x58] sm:$0xff]
  %v1136 = vld [vmem:[%s6 + $0x60] sm:$0xff]
  %v1137 = vld [vmem:[%s6 + $0x68] sm:$0xff]
  %v1138 = vld [vmem:[%s6 + $0x70] sm:$0xff]
  %v1139 = vld [vmem:[%s6 + $0x78] sm:$0xff]
  %v1140 = vld [vmem:[%s7] sm:$0x3]
  %v1142 = vperm.slane %v1140, 0
  %v1143 = vperm.slane %v1140, 1
  %v1162 = vunpack.c.l.b16 %v1124
  %v1163 = vunpack.c.h.b16 %v1124
  %v1164 = vunpack.c.l.b16 %v1125
  %v1165 = vunpack.c.h.b16 %v1125
  %v1166 = vunpack.c.l.b16 %v1126
  %v1167 = vunpack.c.h.b16 %v1126
  %v1168 = vunpack.c.l.b16 %v1127
  %v1169 = vunpack.c.h.b16 %v1127
  %v1170 = vunpack.c.l.b16 %v1128
  %v1171 = vunpack.c.h.b16 %v1128
  %v1172 = vunpack.c.l.b16 %v1129
  %v1173 = vunpack.c.h.b16 %v1129
  %v1174 = vunpack.c.l.b16 %v1130
  %v1175 = vunpack.c.h.b16 %v1130
  %v1176 = vunpack.c.l.b16 %v1131
  %v1177 = vunpack.c.h.b16 %v1131
  %v1178 = vunpack.c.l.b16 %v1132
  %v1179 = vunpack.c.h.b16 %v1132
  %v1180 = vunpack.c.l.b16 %v1133
  %v1181 = vunpack.c.h.b16 %v1133
  %v1182 = vunpack.c.l.b16 %v1134
  %v1183 = vunpack.c.h.b16 %v1134
  %v1184 = vunpack.c.l.b16 %v1135
  %v1185 = vunpack.c.h.b16 %v1135
  %v1186 = vunpack.c.l.b16 %v1136
  %v1187 = vunpack.c.h.b16 %v1136
  %v1188 = vunpack.c.l.b16 %v1137
  %v1189 = vunpack.c.h.b16 %v1137
  %v1190 = vunpack.c.l.b16 %v1138
  %v1191 = vunpack.c.h.b16 %v1138
  %v1192 = vunpack.c.l.b16 %v1139
  %v1193 = vunpack.c.h.b16 %v1139
  %v1194 = vpack.c.b16 %v1164, %v1162
  %v1195 = vpack.c.b16 %v1165, %v1163
  %v1196 = vpack.c.b16 %v1168, %v1166
  %v1197 = vpack.c.b16 %v1169, %v1167
  %v1198 = vpack.c.b16 %v1172, %v1170
  %v1199 = vpack.c.b16 %v1173, %v1171
  %v1200 = vpack.c.b16 %v1176, %v1174
  %v1201 = vpack.c.b16 %v1177, %v1175
  %v1202 = vpack.c.b16 %v1180, %v1178
  %v1203 = vpack.c.b16 %v1181, %v1179
  %v1204 = vpack.c.b16 %v1184, %v1182
  %v1205 = vpack.c.b16 %v1185, %v1183
  %v1206 = vpack.c.b16 %v1188, %v1186
  %v1207 = vpack.c.b16 %v1189, %v1187
  %v1208 = vpack.c.b16 %v1192, %v1190
  %v1209 = vpack.c.b16 %v1193, %v1191
  %1226 = vmatpush.bf16.msra.mxu0 %v1208
  %1227 = vmatpush.bf16.msra.mxu0 %v1206
  %1228 = vmatpush.bf16.msra.mxu0 %v1204
  %1229 = vmatpush.bf16.msra.mxu0 %v1202
  %1230 = vmatpush.bf16.msra.mxu0 %v1200
  %1231 = vmatpush.bf16.msra.mxu0 %v1198
  %1232 = vmatpush.bf16.msra.mxu0 %v1196
  %1233 = vmatpush.bf16.msra.mxu0 %v1194
  %1234 = vmatmul.bf16.gmra.mxu0 %v1123
  %v1235 = vpop.f32.mrf.mxu0
  %v1236 = vadd.f32 %v1142, %v1235
  %v1237 = vpop.f32.mrf.mxu0
  %v1238 = vadd.f32 %v1142, %v1237
  %1239 = vdwg.mxu0
  %1240 = vmatpush.bf16.msra.mxu0 %v1209
  %1241 = vmatpush.bf16.msra.mxu0 %v1207
  %1242 = vmatpush.bf16.msra.mxu0 %v1205
  %1243 = vmatpush.bf16.msra.mxu0 %v1203
  %1244 = vmatpush.bf16.msra.mxu0 %v1201
  %1245 = vmatpush.bf16.msra.mxu0 %v1199
  %1246 = vmatpush.bf16.msra.mxu0 %v1197
  %1247 = vmatpush.bf16.msra.mxu0 %v1195
  %1248 = vmatmul.bf16.gmra.mxu0 %v1123
  %v1249 = vpop.f32.mrf.mxu0
  %v1250 = vadd.f32 %v1143, %v1249
  %v1251 = vpop.f32.mrf.mxu0
  %v1252 = vadd.f32 %v1143, %v1251
  %1253 = vdwg.mxu0
  %v1254 = vmax.f32 %v1236, 0.0
  %v1255 = vmax.f32 %v1250, 0.0
  %v1256 = vmax.f32 %v1238, 0.0
  %v1257 = vmax.f32 %v1252, 0.0
  %v1258 = vpack.c.bf16 %v1256, %v1254
  %v1259 = vpack.c.bf16 %v1257, %v1255
  %v1260 = vld [vmem:[%s8] sm:$0xff]
  %v1261 = vld [vmem:[%s8 + $0x8] sm:$0xff]
  %v1262 = vld [vmem:[%s8 + $0x10] sm:$0xff]
  %v1263 = vld [vmem:[%s8 + $0x18] sm:$0xf]
  %v1264 = vld [vmem:[%s8 + $0x1c] sm:$0xff]
  %v1265 = vld [vmem:[%s8 + $0x24] sm:$0xff]
  %v1266 = vld [vmem:[%s8 + $0x2c] sm:$0xff]
  %v1267 = vld [vmem:[%s8 + $0x34] sm:$0xf]
  %v1268 = vld [vmem:[%s8 + $0x38] sm:$0xff]
  %v1269 = vld [vmem:[%s8 + $0x40] sm:$0xff]
  %v1270 = vld [vmem:[%s8 + $0x48] sm:$0xff]
  %v1271 = vld [vmem:[%s8 + $0x50] sm:$0xf]
  %v1272 = vld [vmem:[%s8 + $0x54] sm:$0xff]
  %v1273 = vld [vmem:[%s8 + $0x5c] sm:$0xff]
  %v1274 = vld [vmem:[%s8 + $0x64] sm:$0xff]
  %v1275 = vld [vmem:[%s8 + $0x6c] sm:$0xf]
  %v1276 = vld [vmem:[%s8 + $0x70] sm:$0xff]
  %v1277 = vld [vmem:[%s8 + $0x78] sm:$0xff]
  %v1278 = vld [vmem:[%s8 + $0x80] sm:$0xff]
  %v1279 = vld [vmem:[%s8 + $0x88] sm:$0xf]
  %v1280 = vld [vmem:[%s8 + $0x8c] sm:$0xff]
  %v1281 = vld [vmem:[%s8 + $0x94] sm:$0xff]
  %v1282 = vld [vmem:[%s8 + $0x9c] sm:$0xff]
  %v1283 = vld [vmem:[%s8 + $0xa4] sm:$0xf]
  %v1284 = vld [vmem:[%s8 + $0xa8] sm:$0xff]
  %v1285 = vld [vmem:[%s8 + $0xb0] sm:$0xff]
  %v1286 = vld [vmem:[%s8 + $0xb8] sm:$0xff]
  %v1287 = vld [vmem:[%s8 + $0xc0] sm:$0xf]
  %v1288 = vld [vmem:[%s8 + $0xc4] sm:$0xff]
  %v1289 = vld [vmem:[%s8 + $0xcc] sm:$0xff]
  %v1290 = vld [vmem:[%s8 + $0xd4] sm:$0xff]
  %v1291 = vld [vmem:[%s8 + $0xdc] sm:$0xf]
  %v1292 = vld [vmem:[%s8 + $0xe0] sm:$0xff]
  %v1293 = vld [vmem:[%s8 + $0xe8] sm:$0xff]
  %v1294 = vld [vmem:[%s8 + $0xf0] sm:$0xff]
  %v1295 = vld [vmem:[%s8 + $0xf8] sm:$0xf]
  %v1296 = vld [vmem:[%s8 + $0xfc] sm:$0xff]
  %v1297 = vld [vmem:[%s8 + $0x104] sm:$0xff]
  %v1298 = vld [vmem:[%s8 + $0x10c] sm:$0xff]
  %v1299 = vld [vmem:[%s8 + $0x114] sm:$0xf]
  %v1300 = vld [vmem:[%s8 + $0x118] sm:$0xff]
  %v1301 = vld [vmem:[%s8 + $0x120] sm:$0xff]
  %v1302 = vld [vmem:[%s8 + $0x128] sm:$0xff]
  %v1303 = vld [vmem:[%s8 + $0x130] sm:$0xf]
  %v1304 = vld [vmem:[%s8 + $0x134] sm:$0xff]
  %v1305 = vld [vmem:[%s8 + $0x13c] sm:$0xff]
  %v1306 = vld [vmem:[%s8 + $0x144] sm:$0xff]
  %v1307 = vld [vmem:[%s8 + $0x14c] sm:$0xf]
  %v1308 = vld [vmem:[%s8 + $0x150] sm:$0xff]
  %v1309 = vld [vmem:[%s8 + $0x158] sm:$0xff]
  %v1310 = vld [vmem:[%s8 + $0x160] sm:$0xff]
  %v1311 = vld [vmem:[%s8 + $0x168] sm:$0xf]
  %v1312 = vld [vmem:[%s8 + $0x16c] sm:$0xff]
  %v1313 = vld [vmem:[%s8 + $0x174] sm:$0xff]
  %v1314 = vld [vmem:[%s8 + $0x17c] sm:$0xff]
  %v1315 = vld [vmem:[%s8 + $0x184] sm:$0xf]
  %v1316 = vld [vmem:[%s8 + $0x188] sm:$0xff]
  %v1317 = vld [vmem:[%s8 + $0x190] sm:$0xff]
  %v1318 = vld [vmem:[%s8 + $0x198] sm:$0xff]
  %v1319 = vld [vmem:[%s8 + $0x1a0] sm:$0xf]
  %v1320 = vld [vmem:[%s8 + $0x1a4] sm:$0xff]
  %v1321 = vld [vmem:[%s8 + $0x1ac] sm:$0xff]
  %v1322 = vld [vmem:[%s8 + $0x1b4] sm:$0xff]
  %v1323 = vld [vmem:[%s8 + $0x1bc] sm:$0xf]
  %v1324 = vld [vmem:[%s8 + $0x1c0] sm:$0xff]
  %v1325 = vld [vmem:[%s8 + $0x1c8] sm:$0xff]
  %v1326 = vld [vmem:[%s8 + $0x1d0] sm:$0xff]
  %v1327 = vld [vmem:[%s8 + $0x1d8] sm:$0xf]
  %v1328 = vld [vmem:[%s8 + $0x1dc] sm:$0xff]
  %v1329 = vld [vmem:[%s8 + $0x1e4] sm:$0xff]
  %v1330 = vld [vmem:[%s8 + $0x1ec] sm:$0xff]
  %v1331 = vld [vmem:[%s8 + $0x1f4] sm:$0xf]
  %v1332 = vld [vmem:[%s8 + $0x1f8] sm:$0xff]
  %v1333 = vld [vmem:[%s8 + $0x200] sm:$0xff]
  %v1334 = vld [vmem:[%s8 + $0x208] sm:$0xff]
  %v1335 = vld [vmem:[%s8 + $0x210] sm:$0xf]
  %v1336 = vld [vmem:[%s8 + $0x214] sm:$0xff]
  %v1337 = vld [vmem:[%s8 + $0x21c] sm:$0xff]
  %v1338 = vld [vmem:[%s8 + $0x224] sm:$0xff]
  %v1339 = vld [vmem:[%s8 + $0x22c] sm:$0xf]
  %v1340 = vld [vmem:[%s8 + $0x230] sm:$0xff]
  %v1341 = vld [vmem:[%s8 + $0x238] sm:$0xff]
  %v1342 = vld [vmem:[%s8 + $0x240] sm:$0xff]
  %v1343 = vld [vmem:[%s8 + $0x248] sm:$0xf]
  %v1344 = vld [vmem:[%s8 + $0x24c] sm:$0xff]
  %v1345 = vld [vmem:[%s8 + $0x254] sm:$0xff]
  %v1346 = vld [vmem:[%s8 + $0x25c] sm:$0xff]
  %v1347 = vld [vmem:[%s8 + $0x264] sm:$0xf]
  %v1348 = vld [vmem:[%s8 + $0x268] sm:$0xff]
  %v1349 = vld [vmem:[%s8 + $0x270] sm:$0xff]
  %v1350 = vld [vmem:[%s8 + $0x278] sm:$0xff]
  %v1351 = vld [vmem:[%s8 + $0x280] sm:$0xf]
  %v1352 = vld [vmem:[%s8 + $0x284] sm:$0xff]
  %v1353 = vld [vmem:[%s8 + $0x28c] sm:$0xff]
  %v1354 = vld [vmem:[%s8 + $0x294] sm:$0xff]
  %v1355 = vld [vmem:[%s8 + $0x29c] sm:$0xf]
  %v1356 = vld [vmem:[%s8 + $0x2a0] sm:$0xff]
  %v1357 = vld [vmem:[%s8 + $0x2a8] sm:$0xff]
  %v1358 = vld [vmem:[%s8 + $0x2b0] sm:$0xff]
  %v1359 = vld [vmem:[%s8 + $0x2b8] sm:$0xf]
  %v1360 = vld [vmem:[%s8 + $0x2bc] sm:$0xff]
  %v1361 = vld [vmem:[%s8 + $0x2c4] sm:$0xff]
  %v1362 = vld [vmem:[%s8 + $0x2cc] sm:$0xff]
  %v1363 = vld [vmem:[%s8 + $0x2d4] sm:$0xf]
  %v1364 = vld [vmem:[%s8 + $0x2d8] sm:$0xff]
  %v1365 = vld [vmem:[%s8 + $0x2e0] sm:$0xff]
  %v1366 = vld [vmem:[%s8 + $0x2e8] sm:$0xff]
  %v1367 = vld [vmem:[%s8 + $0x2f0] sm:$0xf]
  %v1368 = vld [vmem:[%s8 + $0x2f4] sm:$0xff]
  %v1369 = vld [vmem:[%s8 + $0x2fc] sm:$0xff]
  %v1370 = vld [vmem:[%s8 + $0x304] sm:$0xff]
  %v1371 = vld [vmem:[%s8 + $0x30c] sm:$0xf]
  %v1372 = vld [vmem:[%s8 + $0x310] sm:$0xff]
  %v1373 = vld [vmem:[%s8 + $0x318] sm:$0xff]
  %v1374 = vld [vmem:[%s8 + $0x320] sm:$0xff]
  %v1375 = vld [vmem:[%s8 + $0x328] sm:$0xf]
  %v1376 = vld [vmem:[%s8 + $0x32c] sm:$0xff]
  %v1377 = vld [vmem:[%s8 + $0x334] sm:$0xff]
  %v1378 = vld [vmem:[%s8 + $0x33c] sm:$0xff]
  %v1379 = vld [vmem:[%s8 + $0x344] sm:$0xf]
  %v1380 = vld [vmem:[%s8 + $0x348] sm:$0xff]
  %v1381 = vld [vmem:[%s8 + $0x350] sm:$0xff]
  %v1382 = vld [vmem:[%s8 + $0x358] sm:$0xff]
  %v1383 = vld [vmem:[%s8 + $0x360] sm:$0xf]
  %v1384 = vld [vmem:[%s8 + $0x364] sm:$0xff]
  %v1385 = vld [vmem:[%s8 + $0x36c] sm:$0xff]
  %v1386 = vld [vmem:[%s8 + $0x374] sm:$0xff]
  %v1387 = vld [vmem:[%s8 + $0x37c] sm:$0xf]
  %v1388 = vld [vmem:[%s9] sm:$0x7f]
  %v1390 = vperm.slane %v1388, 0
  %v1391 = vperm.slane %v1388, 1
  %v1392 = vperm.slane %v1388, 2
  %v1393 = vperm.slane %v1388, 3
  %v1394 = vperm.slane %v1388, 4
  %v1395 = vperm.slane %v1388, 5
  %v1396 = vperm.slane %v1388, 6
  %v1532 = vunpack.c.l.b16 %v1260
  %v1533 = vunpack.c.h.b16 %v1260
  %v1534 = vunpack.c.l.b16 %v1261
  %v1535 = vunpack.c.h.b16 %v1261
  %v1536 = vunpack.c.l.b16 %v1262
  %v1537 = vunpack.c.h.b16 %v1262
  %v1538 = vunpack.c.l.b16 %v1263
  %v1539 = vunpack.c.l.b16 %v1264
  %v1540 = vunpack.c.h.b16 %v1264
  %v1541 = vunpack.c.l.b16 %v1265
  %v1542 = vunpack.c.h.b16 %v1265
  %v1543 = vunpack.c.l.b16 %v1266
  %v1544 = vunpack.c.h.b16 %v1266
  %v1545 = vunpack.c.l.b16 %v1267
  %v1546 = vunpack.c.l.b16 %v1268
  %v1547 = vunpack.c.h.b16 %v1268
  %v1548 = vunpack.c.l.b16 %v1269
  %v1549 = vunpack.c.h.b16 %v1269
  %v1550 = vunpack.c.l.b16 %v1270
  %v1551 = vunpack.c.h.b16 %v1270
  %v1552 = vunpack.c.l.b16 %v1271
  %v1553 = vunpack.c.l.b16 %v1272
  %v1554 = vunpack.c.h.b16 %v1272
  %v1555 = vunpack.c.l.b16 %v1273
  %v1556 = vunpack.c.h.b16 %v1273
  %v1557 = vunpack.c.l.b16 %v1274
  %v1558 = vunpack.c.h.b16 %v1274
  %v1559 = vunpack.c.l.b16 %v1275
  %v1560 = vunpack.c.l.b16 %v1276
  %v1561 = vunpack.c.h.b16 %v1276
  %v1562 = vunpack.c.l.b16 %v1277
  %v1563 = vunpack.c.h.b16 %v1277
  %v1564 = vunpack.c.l.b16 %v1278
  %v1565 = vunpack.c.h.b16 %v1278
  %v1566 = vunpack.c.l.b16 %v1279
  %v1567 = vunpack.c.l.b16 %v1280
  %v1568 = vunpack.c.h.b16 %v1280
  %v1569 = vunpack.c.l.b16 %v1281
  %v1570 = vunpack.c.h.b16 %v1281
  %v1571 = vunpack.c.l.b16 %v1282
  %v1572 = vunpack.c.h.b16 %v1282
  %v1573 = vunpack.c.l.b16 %v1283
  %v1574 = vunpack.c.l.b16 %v1284
  %v1575 = vunpack.c.h.b16 %v1284
  %v1576 = vunpack.c.l.b16 %v1285
  %v1577 = vunpack.c.h.b16 %v1285
  %v1578 = vunpack.c.l.b16 %v1286
  %v1579 = vunpack.c.h.b16 %v1286
  %v1580 = vunpack.c.l.b16 %v1287
  %v1581 = vunpack.c.l.b16 %v1288
  %v1582 = vunpack.c.h.b16 %v1288
  %v1583 = vunpack.c.l.b16 %v1289
  %v1584 = vunpack.c.h.b16 %v1289
  %v1585 = vunpack.c.l.b16 %v1290
  %v1586 = vunpack.c.h.b16 %v1290
  %v1587 = vunpack.c.l.b16 %v1291
  %v1588 = vunpack.c.l.b16 %v1292
  %v1589 = vunpack.c.h.b16 %v1292
  %v1590 = vunpack.c.l.b16 %v1293
  %v1591 = vunpack.c.h.b16 %v1293
  %v1592 = vunpack.c.l.b16 %v1294
  %v1593 = vunpack.c.h.b16 %v1294
  %v1594 = vunpack.c.l.b16 %v1295
  %v1595 = vunpack.c.l.b16 %v1296
  %v1596 = vunpack.c.h.b16 %v1296
  %v1597 = vunpack.c.l.b16 %v1297
  %v1598 = vunpack.c.h.b16 %v1297
  %v1599 = vunpack.c.l.b16 %v1298
  %v1600 = vunpack.c.h.b16 %v1298
  %v1601 = vunpack.c.l.b16 %v1299
  %v1602 = vunpack.c.l.b16 %v1300
  %v1603 = vunpack.c.h.b16 %v1300
  %v1604 = vunpack.c.l.b16 %v1301
  %v1605 = vunpack.c.h.b16 %v1301
  %v1606 = vunpack.c.l.b16 %v1302
  %v1607 = vunpack.c.h.b16 %v1302
  %v1608 = vunpack.c.l.b16 %v1303
  %v1609 = vunpack.c.l.b16 %v1304
  %v1610 = vunpack.c.h.b16 %v1304
  %v1611 = vunpack.c.l.b16 %v1305
  %v1612 = vunpack.c.h.b16 %v1305
  %v1613 = vunpack.c.l.b16 %v1306
  %v1614 = vunpack.c.h.b16 %v1306
  %v1615 = vunpack.c.l.b16 %v1307
  %v1616 = vunpack.c.l.b16 %v1308
  %v1617 = vunpack.c.h.b16 %v1308
  %v1618 = vunpack.c.l.b16 %v1309
  %v1619 = vunpack.c.h.b16 %v1309
  %v1620 = vunpack.c.l.b16 %v1310
  %v1621 = vunpack.c.h.b16 %v1310
  %v1622 = vunpack.c.l.b16 %v1311
  %v1623 = vunpack.c.l.b16 %v1312
  %v1624 = vunpack.c.h.b16 %v1312
  %v1625 = vunpack.c.l.b16 %v1313
  %v1626 = vunpack.c.h.b16 %v1313
  %v1627 = vunpack.c.l.b16 %v1314
  %v1628 = vunpack.c.h.b16 %v1314
  %v1629 = vunpack.c.l.b16 %v1315
  %v1630 = vunpack.c.l.b16 %v1316
  %v1631 = vunpack.c.h.b16 %v1316
  %v1632 = vunpack.c.l.b16 %v1317
  %v1633 = vunpack.c.h.b16 %v1317
  %v1634 = vunpack.c.l.b16 %v1318
  %v1635 = vunpack.c.h.b16 %v1318
  %v1636 = vunpack.c.l.b16 %v1319
  %v1637 = vunpack.c.l.b16 %v1320
  %v1638 = vunpack.c.h.b16 %v1320
  %v1639 = vunpack.c.l.b16 %v1321
  %v1640 = vunpack.c.h.b16 %v1321
  %v1641 = vunpack.c.l.b16 %v1322
  %v1642 = vunpack.c.h.b16 %v1322
  %v1643 = vunpack.c.l.b16 %v1323
  %v1644 = vunpack.c.l.b16 %v1324
  %v1645 = vunpack.c.h.b16 %v1324
  %v1646 = vunpack.c.l.b16 %v1325
  %v1647 = vunpack.c.h.b16 %v1325
  %v1648 = vunpack.c.l.b16 %v1326
  %v1649 = vunpack.c.h.b16 %v1326
  %v1650 = vunpack.c.l.b16 %v1327
  %v1651 = vunpack.c.l.b16 %v1328
  %v1652 = vunpack.c.h.b16 %v1328
  %v1653 = vunpack.c.l.b16 %v1329
  %v1654 = vunpack.c.h.b16 %v1329
  %v1655 = vunpack.c.l.b16 %v1330
  %v1656 = vunpack.c.h.b16 %v1330
  %v1657 = vunpack.c.l.b16 %v1331
  %v1658 = vunpack.c.l.b16 %v1332
  %v1659 = vunpack.c.h.b16 %v1332
  %v1660 = vunpack.c.l.b16 %v1333
  %v1661 = vunpack.c.h.b16 %v1333
  %v1662 = vunpack.c.l.b16 %v1334
  %v1663 = vunpack.c.h.b16 %v1334
  %v1664 = vunpack.c.l.b16 %v1335
  %v1665 = vunpack.c.l.b16 %v1336
  %v1666 = vunpack.c.h.b16 %v1336
  %v1667 = vunpack.c.l.b16 %v1337
  %v1668 = vunpack.c.h.b16 %v1337
  %v1669 = vunpack.c.l.b16 %v1338
  %v1670 = vunpack.c.h.b16 %v1338
  %v1671 = vunpack.c.l.b16 %v1339
  %v1672 = vunpack.c.l.b16 %v1340
  %v1673 = vunpack.c.h.b16 %v1340
  %v1674 = vunpack.c.l.b16 %v1341
  %v1675 = vunpack.c.h.b16 %v1341
  %v1676 = vunpack.c.l.b16 %v1342
  %v1677 = vunpack.c.h.b16 %v1342
  %v1678 = vunpack.c.l.b16 %v1343
  %v1679 = vunpack.c.l.b16 %v1344
  %v1680 = vunpack.c.h.b16 %v1344
  %v1681 = vunpack.c.l.b16 %v1345
  %v1682 = vunpack.c.h.b16 %v1345
  %v1683 = vunpack.c.l.b16 %v1346
  %v1684 = vunpack.c.h.b16 %v1346
  %v1685 = vunpack.c.l.b16 %v1347
  %v1686 = vunpack.c.l.b16 %v1348
  %v1687 = vunpack.c.h.b16 %v1348
  %v1688 = vunpack.c.l.b16 %v1349
  %v1689 = vunpack.c.h.b16 %v1349
  %v1690 = vunpack.c.l.b16 %v1350
  %v1691 = vunpack.c.h.b16 %v1350
  %v1692 = vunpack.c.l.b16 %v1351
  %v1693 = vunpack.c.l.b16 %v1352
  %v1694 = vunpack.c.h.b16 %v1352
  %v1695 = vunpack.c.l.b16 %v1353
  %v1696 = vunpack.c.h.b16 %v1353
  %v1697 = vunpack.c.l.b16 %v1354
  %v1698 = vunpack.c.h.b16 %v1354
  %v1699 = vunpack.c.l.b16 %v1355
  %v1700 = vunpack.c.l.b16 %v1356
  %v1701 = vunpack.c.h.b16 %v1356
  %v1702 = vunpack.c.l.b16 %v1357
  %v1703 = vunpack.c.h.b16 %v1357
  %v1704 = vunpack.c.l.b16 %v1358
  %v1705 = vunpack.c.h.b16 %v1358
  %v1706 = vunpack.c.l.b16 %v1359
  %v1707 = vunpack.c.l.b16 %v1360
  %v1708 = vunpack.c.h.b16 %v1360
  %v1709 = vunpack.c.l.b16 %v1361
  %v1710 = vunpack.c.h.b16 %v1361
  %v1711 = vunpack.c.l.b16 %v1362
  %v1712 = vunpack.c.h.b16 %v1362
  %v1713 = vunpack.c.l.b16 %v1363
  %v1714 = vunpack.c.l.b16 %v1364
  %v1715 = vunpack.c.h.b16 %v1364
  %v1716 = vunpack.c.l.b16 %v1365
  %v1717 = vunpack.c.h.b16 %v1365
  %v1718 = vunpack.c.l.b16 %v1366
  %v1719 = vunpack.c.h.b16 %v1366
  %v1720 = vunpack.c.l.b16 %v1367
  %v1721 = vunpack.c.l.b16 %v1368
  %v1722 = vunpack.c.h.b16 %v1368
  %v1723 = vunpack.c.l.b16 %v1369
  %v1724 = vunpack.c.h.b16 %v1369
  %v1725 = vunpack.c.l.b16 %v1370
  %v1726 = vunpack.c.h.b16 %v1370
  %v1727 = vunpack.c.l.b16 %v1371
  %v1728 = vunpack.c.l.b16 %v1372
  %v1729 = vunpack.c.h.b16 %v1372
  %v1730 = vunpack.c.l.b16 %v1373
  %v1731 = vunpack.c.h.b16 %v1373
  %v1732 = vunpack.c.l.b16 %v1374
  %v1733 = vunpack.c.h.b16 %v1374
  %v1734 = vunpack.c.l.b16 %v1375
  %v1735 = vunpack.c.l.b16 %v1376
  %v1736 = vunpack.c.h.b16 %v1376
  %v1737 = vunpack.c.l.b16 %v1377
  %v1738 = vunpack.c.h.b16 %v1377
  %v1739 = vunpack.c.l.b16 %v1378
  %v1740 = vunpack.c.h.b16 %v1378
  %v1741 = vunpack.c.l.b16 %v1379
  %v1742 = vunpack.c.l.b16 %v1380
  %v1743 = vunpack.c.h.b16 %v1380
  %v1744 = vunpack.c.l.b16 %v1381
  %v1745 = vunpack.c.h.b16 %v1381
  %v1746 = vunpack.c.l.b16 %v1382
  %v1747 = vunpack.c.h.b16 %v1382
  %v1748 = vunpack.c.l.b16 %v1383
  %v1749 = vunpack.c.l.b16 %v1384
  %v1750 = vunpack.c.h.b16 %v1384
  %v1751 = vunpack.c.l.b16 %v1385
  %v1752 = vunpack.c.h.b16 %v1385
  %v1753 = vunpack.c.l.b16 %v1386
  %v1754 = vunpack.c.h.b16 %v1386
  %v1755 = vunpack.c.l.b16 %v1387
  %v1756 = vpack.c.b16 %v1539, %v1532
  %v1757 = vpack.c.b16 %v1540, %v1533
  %v1758 = vpack.c.b16 %v1541, %v1534
  %v1759 = vpack.c.b16 %v1542, %v1535
  %v1760 = vpack.c.b16 %v1543, %v1536
  %v1761 = vpack.c.b16 %v1544, %v1537
  %v1762 = vpack.c.b16 %v1545, %v1538
  %v1763 = vpack.c.b16 %v1553, %v1546
  %v1764 = vpack.c.b16 %v1554, %v1547
  %v1765 = vpack.c.b16 %v1555, %v1548
  %v1766 = vpack.c.b16 %v1556, %v1549
  %v1767 = vpack.c.b16 %v1557, %v1550
  %v1768 = vpack.c.b16 %v1558, %v1551
  %v1769 = vpack.c.b16 %v1559, %v1552
  %v1770 = vpack.c.b16 %v1567, %v1560
  %v1771 = vpack.c.b16 %v1568, %v1561
  %v1772 = vpack.c.b16 %v1569, %v1562
  %v1773 = vpack.c.b16 %v1570, %v1563
  %v1774 = vpack.c.b16 %v1571, %v1564
  %v1775 = vpack.c.b16 %v1572, %v1565
  %v1776 = vpack.c.b16 %v1573, %v1566
  %v1777 = vpack.c.b16 %v1581, %v1574
  %v1778 = vpack.c.b16 %v1582, %v1575
  %v1779 = vpack.c.b16 %v1583, %v1576
  %v1780 = vpack.c.b16 %v1584, %v1577
  %v1781 = vpack.c.b16 %v1585, %v1578
  %v1782 = vpack.c.b16 %v1586, %v1579
  %v1783 = vpack.c.b16 %v1587, %v1580
  %v1784 = vpack.c.b16 %v1595, %v1588
  %v1785 = vpack.c.b16 %v1596, %v1589
  %v1786 = vpack.c.b16 %v1597, %v1590
  %v1787 = vpack.c.b16 %v1598, %v1591
  %v1788 = vpack.c.b16 %v1599, %v1592
  %v1789 = vpack.c.b16 %v1600, %v1593
  %v1790 = vpack.c.b16 %v1601, %v1594
  %v1791 = vpack.c.b16 %v1609, %v1602
  %v1792 = vpack.c.b16 %v1610, %v1603
  %v1793 = vpack.c.b16 %v1611, %v1604
  %v1794 = vpack.c.b16 %v1612, %v1605
  %v1795 = vpack.c.b16 %v1613, %v1606
  %v1796 = vpack.c.b16 %v1614, %v1607
  %v1797 = vpack.c.b16 %v1615, %v1608
  %v1798 = vpack.c.b16 %v1623, %v1616
  %v1799 = vpack.c.b16 %v1624, %v1617
  %v1800 = vpack.c.b16 %v1625, %v1618
  %v1801 = vpack.c.b16 %v1626, %v1619
  %v1802 = vpack.c.b16 %v1627, %v1620
  %v1803 = vpack.c.b16 %v1628, %v1621
  %v1804 = vpack.c.b16 %v1629, %v1622
  %v1805 = vpack.c.b16 %v1637, %v1630
  %v1806 = vpack.c.b16 %v1638, %v1631
  %v1807 = vpack.c.b16 %v1639, %v1632
  %v1808 = vpack.c.b16 %v1640, %v1633
  %v1809 = vpack.c.b16 %v1641, %v1634
  %v1810 = vpack.c.b16 %v1642, %v1635
  %v1811 = vpack.c.b16 %v1643, %v1636
  %v1812 = vpack.c.b16 %v1651, %v1644
  %v1813 = vpack.c.b16 %v1652, %v1645
  %v1814 = vpack.c.b16 %v1653, %v1646
  %v1815 = vpack.c.b16 %v1654, %v1647
  %v1816 = vpack.c.b16 %v1655, %v1648
  %v1817 = vpack.c.b16 %v1656, %v1649
  %v1818 = vpack.c.b16 %v1657, %v1650
  %v1819 = vpack.c.b16 %v1665, %v1658
  %v1820 = vpack.c.b16 %v1666, %v1659
  %v1821 = vpack.c.b16 %v1667, %v1660
  %v1822 = vpack.c.b16 %v1668, %v1661
  %v1823 = vpack.c.b16 %v1669, %v1662
  %v1824 = vpack.c.b16 %v1670, %v1663
  %v1825 = vpack.c.b16 %v1671, %v1664
  %v1826 = vpack.c.b16 %v1679, %v1672
  %v1827 = vpack.c.b16 %v1680, %v1673
  %v1828 = vpack.c.b16 %v1681, %v1674
  %v1829 = vpack.c.b16 %v1682, %v1675
  %v1830 = vpack.c.b16 %v1683, %v1676
  %v1831 = vpack.c.b16 %v1684, %v1677
  %v1832 = vpack.c.b16 %v1685, %v1678
  %v1833 = vpack.c.b16 %v1693, %v1686
  %v1834 = vpack.c.b16 %v1694, %v1687
  %v1835 = vpack.c.b16 %v1695, %v1688
  %v1836 = vpack.c.b16 %v1696, %v1689
  %v1837 = vpack.c.b16 %v1697, %v1690
  %v1838 = vpack.c.b16 %v1698, %v1691
  %v1839 = vpack.c.b16 %v1699, %v1692
  %v1840 = vpack.c.b16 %v1707, %v1700
  %v1841 = vpack.c.b16 %v1708, %v1701
  %v1842 = vpack.c.b16 %v1709, %v1702
  %v1843 = vpack.c.b16 %v1710, %v1703
  %v1844 = vpack.c.b16 %v1711, %v1704
  %v1845 = vpack.c.b16 %v1712, %v1705
  %v1846 = vpack.c.b16 %v1713, %v1706
  %v1847 = vpack.c.b16 %v1721, %v1714
  %v1848 = vpack.c.b16 %v1722, %v1715
  %v1849 = vpack.c.b16 %v1723, %v1716
  %v1850 = vpack.c.b16 %v1724, %v1717
  %v1851 = vpack.c.b16 %v1725, %v1718
  %v1852 = vpack.c.b16 %v1726, %v1719
  %v1853 = vpack.c.b16 %v1727, %v1720
  %v1854 = vpack.c.b16 %v1735, %v1728
  %v1855 = vpack.c.b16 %v1736, %v1729
  %v1856 = vpack.c.b16 %v1737, %v1730
  %v1857 = vpack.c.b16 %v1738, %v1731
  %v1858 = vpack.c.b16 %v1739, %v1732
  %v1859 = vpack.c.b16 %v1740, %v1733
  %v1860 = vpack.c.b16 %v1741, %v1734
  %v1861 = vpack.c.b16 %v1749, %v1742
  %v1862 = vpack.c.b16 %v1750, %v1743
  %v1863 = vpack.c.b16 %v1751, %v1744
  %v1864 = vpack.c.b16 %v1752, %v1745
  %v1865 = vpack.c.b16 %v1753, %v1746
  %v1866 = vpack.c.b16 %v1754, %v1747
  %v1867 = vpack.c.b16 %v1755, %v1748
  %1980 = vmatpush.bf16.msra.mxu0 %v1805
  %1981 = vmatpush.bf16.msra.mxu0 %v1798
  %1982 = vmatpush.bf16.msra.mxu0 %v1791
  %1983 = vmatpush.bf16.msra.mxu0 %v1784
  %1984 = vmatpush.bf16.msra.mxu0 %v1777
  %1985 = vmatpush.bf16.msra.mxu0 %v1770
  %1986 = vmatpush.bf16.msra.mxu0 %v1763
  %1987 = vmatpush.bf16.msra.mxu0 %v1756
  %1988 = vmatmul.bf16.gmra.mxu0 %v1258
  %v1989 = vpop.f32.mrf.mxu0
  %v1990 = vadd.f32 %v1390, %v1989
  %v1991 = vpop.f32.mrf.mxu0
  %v1992 = vadd.f32 %v1390, %v1991
  %1993 = vdwg.mxu0
  %1994 = vmatpush.bf16.msra.mxu0 %v1861
  %1995 = vmatpush.bf16.msra.mxu0 %v1854
  %1996 = vmatpush.bf16.msra.mxu0 %v1847
  %1997 = vmatpush.bf16.msra.mxu0 %v1840
  %1998 = vmatpush.bf16.msra.mxu0 %v1833
  %1999 = vmatpush.bf16.msra.mxu0 %v1826
  %2000 = vmatpush.bf16.msra.mxu0 %v1819
  %2001 = vmatpush.bf16.msra.mxu0 %v1812
  %2002 = vmatmul.bf16.gmra.mxu0 %v1259
  %v2003 = vpop.f32.mrf.mxu0
  %v2004 = vadd.f32 %v1990, %v2003
  %v2005 = vpop.f32.mrf.mxu0
  %v2006 = vadd.f32 %v1992, %v2005
  %2007 = vdwg.mxu0
  %2008 = vmatpush.bf16.msra.mxu0 %v1806
  %2009 = vmatpush.bf16.msra.mxu0 %v1799
  %2010 = vmatpush.bf16.msra.mxu0 %v1792
  %2011 = vmatpush.bf16.msra.mxu0 %v1785
  %2012 = vmatpush.bf16.msra.mxu0 %v1778
  %2013 = vmatpush.bf16.msra.mxu0 %v1771
  %2014 = vmatpush.bf16.msra.mxu0 %v1764
  %2015 = vmatpush.bf16.msra.mxu0 %v1757
  %2016 = vmatmul.bf16.gmra.mxu0 %v1258
  %v2017 = vpop.f32.mrf.mxu0
  %v2018 = vadd.f32 %v1391, %v2017
  %v2019 = vpop.f32.mrf.mxu0
  %v2020 = vadd.f32 %v1391, %v2019
  %2021 = vdwg.mxu0
  %2022 = vmatpush.bf16.msra.mxu0 %v1862
  %2023 = vmatpush.bf16.msra.mxu0 %v1855
  %2024 = vmatpush.bf16.msra.mxu0 %v1848
  %2025 = vmatpush.bf16.msra.mxu0 %v1841
  %2026 = vmatpush.bf16.msra.mxu0 %v1834
  %2027 = vmatpush.bf16.msra.mxu0 %v1827
  %2028 = vmatpush.bf16.msra.mxu0 %v1820
  %2029 = vmatpush.bf16.msra.mxu0 %v1813
  %2030 = vmatmul.bf16.gmra.mxu0 %v1259
  %v2031 = vpop.f32.mrf.mxu0
  %v2032 = vadd.f32 %v2018, %v2031
  %v2033 = vpop.f32.mrf.mxu0
  %v2034 = vadd.f32 %v2020, %v2033
  %2035 = vdwg.mxu0
  %2036 = vmatpush.bf16.msra.mxu0 %v1807
  %2037 = vmatpush.bf16.msra.mxu0 %v1800
  %2038 = vmatpush.bf16.msra.mxu0 %v1793
  %2039 = vmatpush.bf16.msra.mxu0 %v1786
  %2040 = vmatpush.bf16.msra.mxu0 %v1779
  %2041 = vmatpush.bf16.msra.mxu0 %v1772
  %2042 = vmatpush.bf16.msra.mxu0 %v1765
  %2043 = vmatpush.bf16.msra.mxu0 %v1758
  %2044 = vmatmul.bf16.gmra.mxu0 %v1258
  %v2045 = vpop.f32.mrf.mxu0
  %v2046 = vadd.f32 %v1392, %v2045
  %v2047 = vpop.f32.mrf.mxu0
  %v2048 = vadd.f32 %v1392, %v2047
  %2049 = vdwg.mxu0
  %2050 = vmatpush.bf16.msra.mxu0 %v1863
  %2051 = vmatpush.bf16.msra.mxu0 %v1856
  %2052 = vmatpush.bf16.msra.mxu0 %v1849
  %2053 = vmatpush.bf16.msra.mxu0 %v1842
  %2054 = vmatpush.bf16.msra.mxu0 %v1835
  %2055 = vmatpush.bf16.msra.mxu0 %v1828
  %2056 = vmatpush.bf16.msra.mxu0 %v1821
  %2057 = vmatpush.bf16.msra.mxu0 %v1814
  %2058 = vmatmul.bf16.gmra.mxu0 %v1259
  %v2059 = vpop.f32.mrf.mxu0
  %v2060 = vadd.f32 %v2046, %v2059
  %v2061 = vpop.f32.mrf.mxu0
  %v2062 = vadd.f32 %v2048, %v2061
  %2063 = vdwg.mxu0
  %2064 = vmatpush.bf16.msra.mxu0 %v1808
  %2065 = vmatpush.bf16.msra.mxu0 %v1801
  %2066 = vmatpush.bf16.msra.mxu0 %v1794
  %2067 = vmatpush.bf16.msra.mxu0 %v1787
  %2068 = vmatpush.bf16.msra.mxu0 %v1780
  %2069 = vmatpush.bf16.msra.mxu0 %v1773
  %2070 = vmatpush.bf16.msra.mxu0 %v1766
  %2071 = vmatpush.bf16.msra.mxu0 %v1759
  %2072 = vmatmul.bf16.gmra.mxu0 %v1258
  %v2073 = vpop.f32.mrf.mxu0
  %v2074 = vadd.f32 %v1393, %v2073
  %v2075 = vpop.f32.mrf.mxu0
  %v2076 = vadd.f32 %v1393, %v2075
  %2077 = vdwg.mxu0
  %2078 = vmatpush.bf16.msra.mxu0 %v1864
  %2079 = vmatpush.bf16.msra.mxu0 %v1857
  %2080 = vmatpush.bf16.msra.mxu0 %v1850
  %2081 = vmatpush.bf16.msra.mxu0 %v1843
  %2082 = vmatpush.bf16.msra.mxu0 %v1836
  %2083 = vmatpush.bf16.msra.mxu0 %v1829
  %2084 = vmatpush.bf16.msra.mxu0 %v1822
  %2085 = vmatpush.bf16.msra.mxu0 %v1815
  %2086 = vmatmul.bf16.gmra.mxu0 %v1259
  %v2087 = vpop.f32.mrf.mxu0
  %v2088 = vadd.f32 %v2074, %v2087
  %v2089 = vpop.f32.mrf.mxu0
  %v2090 = vadd.f32 %v2076, %v2089
  %2091 = vdwg.mxu0
  %2092 = vmatpush.bf16.msra.mxu0 %v1809
  %2093 = vmatpush.bf16.msra.mxu0 %v1802
  %2094 = vmatpush.bf16.msra.mxu0 %v1795
  %2095 = vmatpush.bf16.msra.mxu0 %v1788
  %2096 = vmatpush.bf16.msra.mxu0 %v1781
  %2097 = vmatpush.bf16.msra.mxu0 %v1774
  %2098 = vmatpush.bf16.msra.mxu0 %v1767
  %2099 = vmatpush.bf16.msra.mxu0 %v1760
  %2100 = vmatmul.bf16.gmra.mxu0 %v1258
  %v2101 = vpop.f32.mrf.mxu0
  %v2102 = vadd.f32 %v1394, %v2101
  %v2103 = vpop.f32.mrf.mxu0
  %v2104 = vadd.f32 %v1394, %v2103
  %2105 = vdwg.mxu0
  %2106 = vmatpush.bf16.msra.mxu0 %v1865
  %2107 = vmatpush.bf16.msra.mxu0 %v1858
  %2108 = vmatpush.bf16.msra.mxu0 %v1851
  %2109 = vmatpush.bf16.msra.mxu0 %v1844
  %2110 = vmatpush.bf16.msra.mxu0 %v1837
  %2111 = vmatpush.bf16.msra.mxu0 %v1830
  %2112 = vmatpush.bf16.msra.mxu0 %v1823
  %2113 = vmatpush.bf16.msra.mxu0 %v1816
  %2114 = vmatmul.bf16.gmra.mxu0 %v1259
  %v2115 = vpop.f32.mrf.mxu0
  %v2116 = vadd.f32 %v2102, %v2115
  %v2117 = vpop.f32.mrf.mxu0
  %v2118 = vadd.f32 %v2104, %v2117
  %2119 = vdwg.mxu0
  %2120 = vmatpush.bf16.msra.mxu0 %v1810
  %2121 = vmatpush.bf16.msra.mxu0 %v1803
  %2122 = vmatpush.bf16.msra.mxu0 %v1796
  %2123 = vmatpush.bf16.msra.mxu0 %v1789
  %2124 = vmatpush.bf16.msra.mxu0 %v1782
  %2125 = vmatpush.bf16.msra.mxu0 %v1775
  %2126 = vmatpush.bf16.msra.mxu0 %v1768
  %2127 = vmatpush.bf16.msra.mxu0 %v1761
  %2128 = vmatmul.bf16.gmra.mxu0 %v1258
  %v2129 = vpop.f32.mrf.mxu0
  %v2130 = vadd.f32 %v1395, %v2129
  %v2131 = vpop.f32.mrf.mxu0
  %v2132 = vadd.f32 %v1395, %v2131
  %2133 = vdwg.mxu0
  %2134 = vmatpush.bf16.msra.mxu0 %v1866
  %2135 = vmatpush.bf16.msra.mxu0 %v1859
  %2136 = vmatpush.bf16.msra.mxu0 %v1852
  %2137 = vmatpush.bf16.msra.mxu0 %v1845
  %2138 = vmatpush.bf16.msra.mxu0 %v1838
  %2139 = vmatpush.bf16.msra.mxu0 %v1831
  %2140 = vmatpush.bf16.msra.mxu0 %v1824
  %2141 = vmatpush.bf16.msra.mxu0 %v1817
  %2142 = vmatmul.bf16.gmra.mxu0 %v1259
  %v2143 = vpop.f32.mrf.mxu0
  %v2144 = vadd.f32 %v2130, %v2143
  %v2145 = vpop.f32.mrf.mxu0
  %v2146 = vadd.f32 %v2132, %v2145
  %2147 = vdwg.mxu0
  %2148 = vmatpush.bf16.msra.mxu0 %v1811
  %2149 = vmatpush.bf16.msra.mxu0 %v1804
  %2150 = vmatpush.bf16.msra.mxu0 %v1797
  %2151 = vmatpush.bf16.msra.mxu0 %v1790
  %2152 = vmatpush.bf16.msra.mxu0 %v1783
  %2153 = vmatpush.bf16.msra.mxu0 %v1776
  %2154 = vmatpush.bf16.msra.mxu0 %v1769
  %2155 = vmatpush.bf16.msra.mxu0 %v1762
  %2156 = vmatmul.bf16.gmra.mxu0 %v1258
  %v2157 = vpop.f32.mrf.mxu0
  %v2158 = vadd.f32 %v1396, %v2157
  %v2159 = vpop.f32.mrf.mxu0
  %v2160 = vadd.f32 %v1396, %v2159
  %2161 = vdwg.mxu0
  %2162 = vmatpush.bf16.msra.mxu0 %v1867
  %2163 = vmatpush.bf16.msra.mxu0 %v1860
  %2164 = vmatpush.bf16.msra.mxu0 %v1853
  %2165 = vmatpush.bf16.msra.mxu0 %v1846
  %2166 = vmatpush.bf16.msra.mxu0 %v1839
  %2167 = vmatpush.bf16.msra.mxu0 %v1832
  %2168 = vmatpush.bf16.msra.mxu0 %v1825
  %2169 = vmatpush.bf16.msra.mxu0 %v1818
  %2170 = vmatmul.bf16.gmra.mxu0 %v1259
  %v2171 = vpop.f32.mrf.mxu0
  %v2172 = vadd.f32 %v2158, %v2171
  %v2173 = vpop.f32.mrf.mxu0
  %v2174 = vadd.f32 %v2160, %v2173
  %2175 = vdwg.mxu0
  %v2176 = vmul.f32 %v2004, 0.5
  %v2177 = vmul.f32 %v2032, 0.5
  %v2178 = vmul.f32 %v2060, 0.5
  %v2179 = vmul.f32 %v2088, 0.5
  %v2180 = vmul.f32 %v2116, 0.5
  %v2181 = vmul.f32 %v2144, 0.5
  %v2182 = vmul.f32 %v2172, 0.5
  %v2183 = vmul.f32 %v2006, 0.5
  %v2184 = vmul.f32 %v2034, 0.5
  %v2185 = vmul.f32 %v2062, 0.5
  %v2186 = vmul.f32 %v2090, 0.5
  %v2187 = vmul.f32 %v2118, 0.5
  %v2188 = vmul.f32 %v2146, 0.5
  %v2189 = vmul.f32 %v2174, 0.5
  %v2190 = vtanh.pop %v2176
  %v2191 = vtanh.pop %v2177
  %v2192 = vtanh.pop %v2178
  %v2193 = vtanh.pop %v2179
  %v2194 = vtanh.pop %v2180
  %v2195 = vtanh.pop %v2181
  %v2196 = vtanh.pop %v2182
  %v2197 = vtanh.pop %v2183
  %v2198 = vtanh.pop %v2184
  %v2199 = vtanh.pop %v2185
  %v2200 = vtanh.pop %v2186
  %v2201 = vtanh.pop %v2187
  %v2202 = vtanh.pop %v2188
  %v2203 = vtanh.pop %v2189
  %v2204 = vmul.f32 %v2190, 0.5
  %v2205 = vmul.f32 %v2191, 0.5
  %v2206 = vmul.f32 %v2192, 0.5
  %v2207 = vmul.f32 %v2193, 0.5
  %v2208 = vmul.f32 %v2194, 0.5
  %v2209 = vmul.f32 %v2195, 0.5
  %v2210 = vmul.f32 %v2196, 0.5
  %v2211 = vmul.f32 %v2197, 0.5
  %v2212 = vmul.f32 %v2198, 0.5
  %v2213 = vmul.f32 %v2199, 0.5
  %v2214 = vmul.f32 %v2200, 0.5
  %v2215 = vmul.f32 %v2201, 0.5
  %v2216 = vmul.f32 %v2202, 0.5
  %v2217 = vmul.f32 %v2203, 0.5
  %v2218 = vadd.f32 %v2204, 0.5
  %v2219 = vadd.f32 %v2205, 0.5
  %v2220 = vadd.f32 %v2206, 0.5
  %v2221 = vadd.f32 %v2207, 0.5
  %v2222 = vadd.f32 %v2208, 0.5
  %v2223 = vadd.f32 %v2209, 0.5
  %v2224 = vadd.f32 %v2210, 0.5
  %v2225 = vadd.f32 %v2211, 0.5
  %v2226 = vadd.f32 %v2212, 0.5
  %v2227 = vadd.f32 %v2213, 0.5
  %v2228 = vadd.f32 %v2214, 0.5
  %v2229 = vadd.f32 %v2215, 0.5
  %v2230 = vadd.f32 %v2216, 0.5
  %v2231 = vadd.f32 %v2217, 0.5
  %v2232 = vpack.c.bf16 %v2219, %v2218
  %v2233 = vpack.c.bf16 %v2221, %v2220
  %v2234 = vpack.c.bf16 %v2223, %v2222
  %v2235 = vpack.c.bf16 %v2224, %v2224
  %v2236 = vpack.c.bf16 %v2226, %v2225
  %v2237 = vpack.c.bf16 %v2228, %v2227
  %v2238 = vpack.c.bf16 %v2230, %v2229
  %v2239 = vpack.c.bf16 %v2231, %v2231
  %2240 = vst [vmem:[%s10] sm:$0xff] %v2232
  %2241 = vst [vmem:[%s10 + $0x8] sm:$0xff] %v2233
  %2242 = vst [vmem:[%s10 + $0x10] sm:$0xff] %v2234
  %vm2243 = vcmask 125952
  %2244 = vst.msk [vmem:[%s10 + $0x18] sm:$0xf] %vm2243, %v2235
  %2245 = vst [vmem:[%s10 + $0x1c] sm:$0xff] %v2236
  %2246 = vst [vmem:[%s10 + $0x24] sm:$0xff] %v2237
  %2247 = vst [vmem:[%s10 + $0x2c] sm:$0xff] %v2238
  %2248 = vst.msk [vmem:[%s10 + $0x34] sm:$0xf] %vm2243, %v2239
  %2249 = vst [vmem:[%s11] sm:$0xff] %v1081
  %2250 = vst [vmem:[%s11 + $0x10] sm:$0xff] %v1083
  %2251 = vst [vmem:[%s11 + $0x8] sm:$0xff] %v1114
  %2252 = vst [vmem:[%s11 + $0x18] sm:$0xff] %v1116
  // Predicated region
  $region42: #{_vae_forward.1} parent=0 // pred_check
    _
  $region43: #{_vae_forward.1} parent=0 // pred_check_branch
    %2254 = sbr.rel (0) target = $region45
  $region44: #{_vae_forward.1} parent=0 // pred_region
    _
  $region45: #{_vae_forward.1} parent=0 // pred_fallthru
    _
  // Predicated region
  $region46: #{_vae_forward.1} parent=0 // pred_check
    _
  $region47: #{_vae_forward.1} parent=0 // pred_check_branch
    %2256 = sbr.rel (0) target = $region49
  $region48: #{_vae_forward.1} parent=0 // pred_region
    _
  $region49: #{_vae_forward.1} parent=0 // pred_fallthru
    _
  // Predicated region
  $region50: #{_vae_forward.1} parent=0 // pred_check
    _
  $region51: #{_vae_forward.1} parent=0 // pred_check_branch
    %2258 = sbr.rel (0) target = $region53
  $region52: #{_vae_forward.1} parent=0 // pred_region
    _
  $region53: #{_vae_forward.1} parent=0 // pred_fallthru
    _
  // Predicated region
  $region54: #{_vae_forward.1} parent=0 // pred_check
    _
  $region55: #{_vae_forward.1} parent=0 // pred_check_branch
    %2260 = sbr.rel (0) target = $region57
  $region56: #{_vae_forward.1} parent=0 // pred_region
    _
  $region57: #{_vae_forward.1} parent=0 // pred_fallthru
    _

</llo_original>
